<compile_context>
chip_gen: v5e
topology: v5e:2x2
jax: 0.10.0
libtpu: 0.0.40
codegen_flags: <defaults>
</compile_context>

<pallas_src>
import jax
import jax.numpy as jnp
from jax.experimental import pallas as pl
from jax.experimental.pallas import tpu as pltpu

# MLP: 12 -> 128 -> 256 -> 256 -> 128 -> 1, ReLU between hidden layers.
LAYER_DIMS = [12, 128, 256, 256, 128, 1]
_FLOPS_PER_ROW = 2 * sum(i * o for i, o in zip(LAYER_DIMS[:-1], LAYER_DIMS[1:]))


def mlp_kernel(xt_ref,
               w1_ref, b1_ref,
               w2_ref, b2_ref,
               w3_ref, b3_ref,
               w4_ref, b4_ref,
               w5_ref, b5_ref,
               o_ref):
    """Feature-major MLP: activations are (features, batch_tile).

    Weights are (out_features, in_features) (PyTorch layout), so every layer
    is a standard (M,K)x(K,N) matmul with f32 accumulation; ReLU + bf16 cast
    are fused so inter-layer activations are materialized in bf16.
    """
    cdt = w1_ref.dtype  # compute dtype for MXU operands (bf16 by default)

    h = xt_ref[...].astype(cdt)                                   # (12, tile)

    h = jnp.dot(w1_ref[...], h, preferred_element_type=jnp.float32) + b1_ref[...]
    h = jnp.maximum(h, 0.0).astype(cdt)                           # (128, tile) bf16

    h = jnp.dot(w2_ref[...], h, preferred_element_type=jnp.float32) + b2_ref[...]
    h = jnp.maximum(h, 0.0).astype(cdt)                           # (256, tile) bf16

    h = jnp.dot(w3_ref[...], h, preferred_element_type=jnp.float32) + b3_ref[...]
    h = jnp.maximum(h, 0.0).astype(cdt)                           # (256, tile) bf16

    h = jnp.dot(w4_ref[...], h, preferred_element_type=jnp.float32) + b4_ref[...]
    h = jnp.maximum(h, 0.0).astype(cdt)                           # (128, tile) bf16

    # TODO(synk): dropout after each ReLU is identity (inference mode only).

    # Final 1-wide layer: (1,128)x(128,tile) -> lane-dense (1, tile) block.
    y = jnp.dot(w5_ref[...], h, preferred_element_type=jnp.float32) + b5_ref[...]
    o_ref[...] = y.astype(o_ref.dtype)


def _round_up(n, m):
    return ((n + m - 1) // m) * m


def neural_network_forward(x, params, *, batch_tile=2048,
                           compute_dtype=jnp.bfloat16,
                           vmem_limit_bytes=None):
    """x: (B, 12) float32. params: list of (W, b) with W:(in,out), b:(1,out)."""
    B, F = x.shape
    assert F == LAYER_DIMS[0]

    # Effective tile: multiple of 256, capped at batch_tile; for large B aim
    # for >= 2 grid steps so the "parallel" axis shards across both v7x TCs.
    target = B if B <= 512 else -(-B // 2)
    tile = max(256, min(batch_tile, _round_up(target, 256)))
    num_tiles = -(-B // tile)
    B_pad = num_tiles * tile

    (w1, b1), (w2, b2), (w3, b3), (w4, b4), (w5, b5) = params

    # PyTorch-layout (out, in) weights in reduced precision for the MXU;
    # biases stay f32 as (out, 1) columns (broadcast along the lane/batch dim).
    wts = [w.T.astype(compute_dtype) for w in (w1, w2, w3, w4, w5)]
    bss = [b.reshape(-1, 1).astype(jnp.float32) for b in (b1, b2, b3, b4, b5)]

    # Feature-major input: (12, B). Pad the batch axis only when needed —
    # callers with large B should pass a multiple of the tile to avoid the
    # extra HBM pass.
    x_t = x.T
    if B_pad != B:
        x_t = jnp.pad(x_t, ((0, 0), (0, B_pad - B)))

    flat = [x_t]
    for w, b in zip(wts, bss):
        flat += [w, b]

    def const_spec(shape):
        # Constant index_map -> block is resident in VMEM, no re-DMA per step.
        return pl.BlockSpec(shape, lambda i: (0, 0))

    in_specs = [pl.BlockSpec((F, tile), lambda i: (0, i))]
    in_specs += [const_spec(a.shape) for a in flat[1:]]

    # Advisory cost hint for XLA scheduling around the custom call.
    weight_bytes = sum(int(a.size) * a.dtype.itemsize for a in flat[1:])
    cost = pl.CostEstimate(
        flops=int(_FLOPS_PER_ROW) * int(B_pad),
        transcendentals=0,
        bytes_accessed=int(x_t.size) * x_t.dtype.itemsize
        + int(B_pad) * 4 + weight_bytes,
    )

    # Rough per-step VMEM need: double-buffered (12,tile)/(1,tile) blocks,
    # resident weights, and a few (256,tile) activation temporaries.
    cp_kwargs = dict(dimension_semantics=("parallel",))
    vmem_est = tile * 3300 + (2 << 20)
    if vmem_limit_bytes is None and vmem_est > (12 << 20):
        # Only raise the scoped limit when big tiles actually need it; cap at
        # 64 MiB so the request stays valid on v7x (64 MiB physical VMEM).
        vmem_limit_bytes = min(2 * vmem_est, 64 << 20)
    if vmem_limit_bytes is not None:
        cp_kwargs["vmem_limit_bytes"] = int(vmem_limit_bytes)

    out = pl.pallas_call(
        mlp_kernel,
        out_shape=jax.ShapeDtypeStruct((1, B_pad), x.dtype),
        grid_spec=pltpu.PrefetchScalarGridSpec(
            num_scalar_prefetch=0,
            grid=(num_tiles,),
            in_specs=in_specs,
            out_specs=pl.BlockSpec((1, tile), lambda i: (0, i)),
        ),
        compiler_params=pltpu.CompilerParams(**cp_kwargs),
        cost_estimate=cost,
    )(*flat)

    # (1, B_pad) -> (B, 1); the reshape is layout-preserving in row-major.
    return out.reshape(B_pad, 1)[:B]


def init_params(key):
    params = []
    for fan_in, fan_out in zip(LAYER_DIMS[:-1], LAYER_DIMS[1:]):
        key, kw, kb = jax.random.split(key, 3)
        bound = 1.0 / jnp.sqrt(fan_in)
        w = jax.random.uniform(kw, (fan_in, fan_out), jnp.float32, -bound, bound)
        b = jax.random.uniform(kb, (1, fan_out), jnp.float32, -bound, bound)
        params.append((w, b))
    return params


def reference_forward(x, params, compute_dtype=jnp.float32):
    """Pure-JAX reference. compute_dtype emulates the kernel's MXU input dtype."""
    h = x.astype(jnp.float32)
    n = len(params)
    for i, (w, b) in enumerate(params):
        h = jnp.dot(h.astype(compute_dtype), w.astype(compute_dtype),
                    preferred_element_type=jnp.float32) + b.astype(jnp.float32)
        if i < n - 1:
            h = jnp.maximum(h, 0.0)
    return h


if __name__ == "__main__":
    key = jax.random.PRNGKey(0)
    key, kx = jax.random.split(key)
    B = 64
    x = jax.random.normal(kx, (B, LAYER_DIMS[0]), jnp.float32)

    params = init_params(key)

    out = neural_network_forward(x, params)   # bf16 weights/activations, f32 accumulate
    out = jax.block_until_ready(out)

    ref = reference_forward(x, params, compute_dtype=jnp.bfloat16)
    assert out.shape == (B, 1), out.shape
    assert jnp.allclose(out, ref, atol=1e-2, rtol=1e-2), (
        f"max abs err = {jnp.max(jnp.abs(out - ref))}")

    print("KERNEL_OK")
</pallas_src>

<mosaic_0001>
module attributes {stable_mosaic.version = 11 : i64} {
  func.func @mlp_kernel(%arg0: i32, %arg1: memref<12x256xf32, #tpu.memory_space<vmem>>, %arg2: memref<128x12xbf16, #tpu.memory_space<vmem>>, %arg3: memref<128x1xf32, #tpu.memory_space<vmem>>, %arg4: memref<256x128xbf16, #tpu.memory_space<vmem>>, %arg5: memref<256x1xf32, #tpu.memory_space<vmem>>, %arg6: memref<256x256xbf16, #tpu.memory_space<vmem>>, %arg7: memref<256x1xf32, #tpu.memory_space<vmem>>, %arg8: memref<128x256xbf16, #tpu.memory_space<vmem>>, %arg9: memref<128x1xf32, #tpu.memory_space<vmem>>, %arg10: memref<1x128xbf16, #tpu.memory_space<vmem>>, %arg11: memref<1x1xf32, #tpu.memory_space<vmem>>, %arg12: memref<1x256xf32, #tpu.memory_space<vmem>>) attributes {dimension_semantics = [#tpu.dimension_semantics<parallel>], iteration_bounds = array<i64: 1>, scalar_prefetch = 0 : i64, scratch_operands = 0 : i64, tpu.core_type = #tpu.core_type<tc>, window_params = [{transform_indices = @transform_0, window_bounds = array<i64: 12, 256>}, {pipeline_mode = #tpu.pipeline_mode<synchronous>, transform_indices = @transform_1, window_bounds = array<i64: 128, 12>}, {pipeline_mode = #tpu.pipeline_mode<synchronous>, transform_indices = @transform_2, window_bounds = array<i64: 128, 1>}, {pipeline_mode = #tpu.pipeline_mode<synchronous>, transform_indices = @transform_3, window_bounds = array<i64: 256, 128>}, {pipeline_mode = #tpu.pipeline_mode<synchronous>, transform_indices = @transform_4, window_bounds = array<i64: 256, 1>}, {pipeline_mode = #tpu.pipeline_mode<synchronous>, transform_indices = @transform_5, window_bounds = array<i64: 256, 256>}, {pipeline_mode = #tpu.pipeline_mode<synchronous>, transform_indices = @transform_6, window_bounds = array<i64: 256, 1>}, {pipeline_mode = #tpu.pipeline_mode<synchronous>, transform_indices = @transform_7, window_bounds = array<i64: 128, 256>}, {pipeline_mode = #tpu.pipeline_mode<synchronous>, transform_indices = @transform_8, window_bounds = array<i64: 128, 1>}, {pipeline_mode = #tpu.pipeline_mode<synchronous>, transform_indices = @transform_9, window_bounds = array<i64: 1, 128>}, {pipeline_mode = #tpu.pipeline_mode<synchronous>, transform_indices = @transform_10, window_bounds = array<i64: 1, 1>}, {transform_indices = @transform_11, window_bounds = array<i64: 1, 256>}]} {
    %c0 = arith.constant 0 : index
    %c0_0 = arith.constant 0 : index
    %0 = vector.load %arg1[%c0, %c0_0] : memref<12x256xf32, #tpu.memory_space<vmem>>, vector<12x256xf32>
    %1 = arith.truncf %0 : vector<12x256xf32> to vector<12x256xbf16>
    %c0_1 = arith.constant 0 : index
    %c0_2 = arith.constant 0 : index
    %2 = vector.load %arg2[%c0_1, %c0_2] : memref<128x12xbf16, #tpu.memory_space<vmem>>, vector<128x12xbf16>
    %cst = arith.constant dense<0.000000e+00> : vector<128x256xf32>
    %3 = tpu.matmul %2, %1, %cst {dimension_numbers = #tpu.dot_dimension_numbers<[1], [0], [0], [1], [0, 0, 1, 1], [], []>} : vector<128x12xbf16>, vector<12x256xbf16>, vector<128x256xf32> -> vector<128x256xf32>
    %c0_3 = arith.constant 0 : index
    %c0_4 = arith.constant 0 : index
    %4 = vector.load %arg3[%c0_3, %c0_4] : memref<128x1xf32, #tpu.memory_space<vmem>>, vector<128x1xf32>
    %5 = vector.broadcast %4 : vector<128x1xf32> to vector<128x256xf32>
    %6 = arith.addf %3, %5 : vector<128x256xf32>
    %cst_5 = arith.constant 0.000000e+00 : f32
    %7 = vector.broadcast %cst_5 : f32 to vector<128x256xf32>
    %8 = arith.maximumf %6, %7 : vector<128x256xf32>
    %9 = arith.truncf %8 : vector<128x256xf32> to vector<128x256xbf16>
    %c0_6 = arith.constant 0 : index
    %c0_7 = arith.constant 0 : index
    %10 = vector.load %arg4[%c0_6, %c0_7] : memref<256x128xbf16, #tpu.memory_space<vmem>>, vector<256x128xbf16>
    %cst_8 = arith.constant dense<0.000000e+00> : vector<256x256xf32>
    %11 = tpu.matmul %10, %9, %cst_8 {dimension_numbers = #tpu.dot_dimension_numbers<[1], [0], [0], [1], [0, 0, 1, 1], [], []>} : vector<256x128xbf16>, vector<128x256xbf16>, vector<256x256xf32> -> vector<256x256xf32>
    %c0_9 = arith.constant 0 : index
    %c0_10 = arith.constant 0 : index
    %12 = vector.load %arg5[%c0_9, %c0_10] : memref<256x1xf32, #tpu.memory_space<vmem>>, vector<256x1xf32>
    %13 = vector.broadcast %12 : vector<256x1xf32> to vector<256x256xf32>
    %14 = arith.addf %11, %13 : vector<256x256xf32>
    %cst_11 = arith.constant 0.000000e+00 : f32
    %15 = vector.broadcast %cst_11 : f32 to vector<256x256xf32>
    %16 = arith.maximumf %14, %15 : vector<256x256xf32>
    %17 = arith.truncf %16 : vector<256x256xf32> to vector<256x256xbf16>
    %c0_12 = arith.constant 0 : index
    %c0_13 = arith.constant 0 : index
    %18 = vector.load %arg6[%c0_12, %c0_13] : memref<256x256xbf16, #tpu.memory_space<vmem>>, vector<256x256xbf16>
    %cst_14 = arith.constant dense<0.000000e+00> : vector<256x256xf32>
    %19 = tpu.matmul %18, %17, %cst_14 {dimension_numbers = #tpu.dot_dimension_numbers<[1], [0], [0], [1], [0, 0, 1, 1], [], []>} : vector<256x256xbf16>, vector<256x256xbf16>, vector<256x256xf32> -> vector<256x256xf32>
    %c0_15 = arith.constant 0 : index
    %c0_16 = arith.constant 0 : index
    %20 = vector.load %arg7[%c0_15, %c0_16] : memref<256x1xf32, #tpu.memory_space<vmem>>, vector<256x1xf32>
    %21 = vector.broadcast %20 : vector<256x1xf32> to vector<256x256xf32>
    %22 = arith.addf %19, %21 : vector<256x256xf32>
    %cst_17 = arith.constant 0.000000e+00 : f32
    %23 = vector.broadcast %cst_17 : f32 to vector<256x256xf32>
    %24 = arith.maximumf %22, %23 : vector<256x256xf32>
    %25 = arith.truncf %24 : vector<256x256xf32> to vector<256x256xbf16>
    %c0_18 = arith.constant 0 : index
    %c0_19 = arith.constant 0 : index
    %26 = vector.load %arg8[%c0_18, %c0_19] : memref<128x256xbf16, #tpu.memory_space<vmem>>, vector<128x256xbf16>
    %cst_20 = arith.constant dense<0.000000e+00> : vector<128x256xf32>
    %27 = tpu.matmul %26, %25, %cst_20 {dimension_numbers = #tpu.dot_dimension_numbers<[1], [0], [0], [1], [0, 0, 1, 1], [], []>} : vector<128x256xbf16>, vector<256x256xbf16>, vector<128x256xf32> -> vector<128x256xf32>
    %c0_21 = arith.constant 0 : index
    %c0_22 = arith.constant 0 : index
    %28 = vector.load %arg9[%c0_21, %c0_22] : memref<128x1xf32, #tpu.memory_space<vmem>>, vector<128x1xf32>
    %29 = vector.broadcast %28 : vector<128x1xf32> to vector<128x256xf32>
    %30 = arith.addf %27, %29 : vector<128x256xf32>
    %cst_23 = arith.constant 0.000000e+00 : f32
    %31 = vector.broadcast %cst_23 : f32 to vector<128x256xf32>
    %32 = arith.maximumf %30, %31 : vector<128x256xf32>
    %33 = arith.truncf %32 : vector<128x256xf32> to vector<128x256xbf16>
    %c0_24 = arith.constant 0 : index
    %c0_25 = arith.constant 0 : index
    %34 = vector.load %arg10[%c0_24, %c0_25] : memref<1x128xbf16, #tpu.memory_space<vmem>>, vector<1x128xbf16>
    %cst_26 = arith.constant dense<0.000000e+00> : vector<1x256xf32>
    %35 = tpu.matmul %34, %33, %cst_26 {dimension_numbers = #tpu.dot_dimension_numbers<[1], [0], [0], [1], [0, 0, 1, 1], [], []>} : vector<1x128xbf16>, vector<128x256xbf16>, vector<1x256xf32> -> vector<1x256xf32>
    %c0_27 = arith.constant 0 : index
    %c0_28 = arith.constant 0 : index
    %36 = vector.load %arg11[%c0_27, %c0_28] : memref<1x1xf32, #tpu.memory_space<vmem>>, vector<1x1xf32>
    %37 = vector.broadcast %36 : vector<1x1xf32> to vector<1x256xf32>
    %38 = arith.addf %35, %37 : vector<1x256xf32>
    %c0_29 = arith.constant 0 : index
    %c0_30 = arith.constant 0 : index
    %39 = vector.load %arg12[%c0_29, %c0_30] : memref<1x256xf32, #tpu.memory_space<vmem>>, vector<1x256xf32>
    tpu.vector_store %arg12[%c0_29, %c0_30], %38 {strides = array<i32>} : memref<1x256xf32, #tpu.memory_space<vmem>>, vector<1x256xf32>,
    return
  }
  func.func @transform_0(%arg0: i32) -> (i32, i32) {
    %c0_i32 = arith.constant 0 : i32
    %c0_i32_0 = arith.constant 0 : i32
    return %c0_i32, %arg0 : i32, i32
  }
  func.func @transform_1(%arg0: i32) -> (i32, i32) {
    %c0_i32 = arith.constant 0 : i32
    %c0_i32_0 = arith.constant 0 : i32
    %c0_i32_1 = arith.constant 0 : i32
    return %c0_i32, %c0_i32_0 : i32, i32
  }
  func.func @transform_2(%arg0: i32) -> (i32, i32) {
    %c0_i32 = arith.constant 0 : i32
    %c0_i32_0 = arith.constant 0 : i32
    %c0_i32_1 = arith.constant 0 : i32
    return %c0_i32, %c0_i32_0 : i32, i32
  }
  func.func @transform_3(%arg0: i32) -> (i32, i32) {
    %c0_i32 = arith.constant 0 : i32
    %c0_i32_0 = arith.constant 0 : i32
    %c0_i32_1 = arith.constant 0 : i32
    return %c0_i32, %c0_i32_0 : i32, i32
  }
  func.func @transform_4(%arg0: i32) -> (i32, i32) {
    %c0_i32 = arith.constant 0 : i32
    %c0_i32_0 = arith.constant 0 : i32
    %c0_i32_1 = arith.constant 0 : i32
    return %c0_i32, %c0_i32_0 : i32, i32
  }
  func.func @transform_5(%arg0: i32) -> (i32, i32) {
    %c0_i32 = arith.constant 0 : i32
    %c0_i32_0 = arith.constant 0 : i32
    %c0_i32_1 = arith.constant 0 : i32
    return %c0_i32, %c0_i32_0 : i32, i32
  }
  func.func @transform_6(%arg0: i32) -> (i32, i32) {
    %c0_i32 = arith.constant 0 : i32
    %c0_i32_0 = arith.constant 0 : i32
    %c0_i32_1 = arith.constant 0 : i32
    return %c0_i32, %c0_i32_0 : i32, i32
  }
  func.func @transform_7(%arg0: i32) -> (i32, i32) {
    %c0_i32 = arith.constant 0 : i32
    %c0_i32_0 = arith.constant 0 : i32
    %c0_i32_1 = arith.constant 0 : i32
    return %c0_i32, %c0_i32_0 : i32, i32
  }
  func.func @transform_8(%arg0: i32) -> (i32, i32) {
    %c0_i32 = arith.constant 0 : i32
    %c0_i32_0 = arith.constant 0 : i32
    %c0_i32_1 = arith.constant 0 : i32
    return %c0_i32, %c0_i32_0 : i32, i32
  }
  func.func @transform_9(%arg0: i32) -> (i32, i32) {
    %c0_i32 = arith.constant 0 : i32
    %c0_i32_0 = arith.constant 0 : i32
    %c0_i32_1 = arith.constant 0 : i32
    return %c0_i32, %c0_i32_0 : i32, i32
  }
  func.func @transform_10(%arg0: i32) -> (i32, i32) {
    %c0_i32 = arith.constant 0 : i32
    %c0_i32_0 = arith.constant 0 : i32
    %c0_i32_1 = arith.constant 0 : i32
    return %c0_i32, %c0_i32_0 : i32, i32
  }
  func.func @transform_11(%arg0: i32) -> (i32, i32) {
    %c0_i32 = arith.constant 0 : i32
    %c0_i32_0 = arith.constant 0 : i32
    return %c0_i32, %arg0 : i32, i32
  }
}

</mosaic_0001>

<llo_original>
// kernel: tpu_custom_call.1
$region0: #{tpu_custom_call.1}
  #allocation0 [shape = 'u32[]', space=smem, size = 0x4, offset = 0x4, fixed_abs, tag = 'smem constant byte address 0x4 - core index']
  #allocation1 [shape = 'u32[72,128]{1,0:T(1,128)}', space=vmem, size = 0x9000, scoped, tag = 'internal scratch']
  #allocation2 [shape = 'f32[1,1]{1,0:T(1,128)S(1)}', space=vmem, size = 0x200, scoped, tag = 'scoped memory for tpu_custom_call.1']
  %s0 = inlined_call_operand.vmem [shape: f32[12,256], index: 0, kind: input, shape index: {}]
  %s1 = inlined_call_operand.vmem [shape: bf16[128,12], index: 1, kind: input, shape index: {}]
  %s2 = inlined_call_operand.vmem [shape: f32[128,1], index: 2, kind: input, shape index: {}]
  %s3 = inlined_call_operand.vmem [shape: bf16[256,128], index: 3, kind: input, shape index: {}]
  %s4 = inlined_call_operand.vmem [shape: f32[256,1], index: 4, kind: input, shape index: {}]
  %s5 = inlined_call_operand.vmem [shape: bf16[256,256], index: 5, kind: input, shape index: {}]
  %s6 = inlined_call_operand.vmem [shape: f32[256,1], index: 6, kind: input, shape index: {}]
  %s7 = inlined_call_operand.vmem [shape: bf16[128,256], index: 7, kind: input, shape index: {}]
  %s8 = inlined_call_operand.vmem [shape: f32[128,1], index: 8, kind: input, shape index: {}]
  %s9 = inlined_call_operand.vmem [shape: bf16[1,128], index: 9, kind: input, shape index: {}]
  %s10 = inlined_call_operand.<no memory space> [shape: f32[1,1], index: 10, kind: input, shape index: {}]
  %s11 = inlined_call_operand.hbm [shape: f32[1,256], index: 11, kind: output, shape index: {}]
  %s12 = sld [smem:[#allocation0]]
  $region54: #{tpu_custom_call.1} parent=0
    _
  %s14 = ssub.s32 1, %s12
  %s15 = scalar_select 0, %s14, %s12
  %v16 = vstv %s10
  %17 = vst [vmem:[#allocation2] sm:$0x1] %v16
  $region1: #{tpu_custom_call.1} parent=0
    #allocation3 [shape = 'u8[1024]{0}', space=vmem, size = 0x400, scoped, tag = 'output window, operand 0, single buffered']
    #allocation4 [shape = 's32[1]{0}', space=sflag, size = 0x4, scoped, tag = 'scoped memory for tpu_custom_call.1']
    %18 = vsyncpa [#allocation4], 0
    // Predicated region
    $region2: #{tpu_custom_call.1} parent=1 // pred_check
      _
    $region3: #{tpu_custom_call.1} parent=1 // pred_check_branch
      %20 = sbr.rel (0) target = $region5
    $region4: #{tpu_custom_call.1} parent=1 // pred_region
      _
    $region5: #{tpu_custom_call.1} parent=1 // pred_fallthru
      _
    // Predicated region
    $region6: #{tpu_custom_call.1} parent=1 // pred_check
      _
    $region7: #{tpu_custom_call.1} parent=1 // pred_check_branch
      %22 = sbr.rel (0) target = $region9
    $region8: #{tpu_custom_call.1} parent=1 // pred_region
      _
    $region9: #{tpu_custom_call.1} parent=1 // pred_fallthru
      _
    // Predicated region
    $region10: #{tpu_custom_call.1} parent=1 // pred_check
      _
    $region11: #{tpu_custom_call.1} parent=1 // pred_check_branch
      %24 = sbr.rel (0) target = $region13
    $region12: #{tpu_custom_call.1} parent=1 // pred_region
      _
    $region13: #{tpu_custom_call.1} parent=1 // pred_fallthru
      _
    // Predicated region
    $region14: #{tpu_custom_call.1} parent=1 // pred_check
      _
    $region15: #{tpu_custom_call.1} parent=1 // pred_check_branch
      %26 = sbr.rel (0) target = $region17
    $region16: #{tpu_custom_call.1} parent=1 // pred_region
      _
    $region17: #{tpu_custom_call.1} parent=1 // pred_fallthru
      _
    // Predicated region
    $region18: #{tpu_custom_call.1} parent=1 // pred_check
      _
    $region19: #{tpu_custom_call.1} parent=1 // pred_check_branch
      %28 = sbr.rel (0) target = $region21
    $region20: #{tpu_custom_call.1} parent=1 // pred_region
      _
    $region21: #{tpu_custom_call.1} parent=1 // pred_fallthru
      _
    // Predicated region
    $region22: #{tpu_custom_call.1} parent=1 // pred_check
      _
    $region23: #{tpu_custom_call.1} parent=1 // pred_check_branch
      %30 = sbr.rel (0) target = $region25
    $region24: #{tpu_custom_call.1} parent=1 // pred_region
      _
    $region25: #{tpu_custom_call.1} parent=1 // pred_fallthru
      _
    // Predicated region
    $region26: #{tpu_custom_call.1} parent=1 // pred_check
      _
    $region27: #{tpu_custom_call.1} parent=1 // pred_check_branch
      %32 = sbr.rel (0) target = $region29
    $region28: #{tpu_custom_call.1} parent=1 // pred_region
      _
    $region29: #{tpu_custom_call.1} parent=1 // pred_fallthru
      _
    // Predicated region
    $region30: #{tpu_custom_call.1} parent=1 // pred_check
      _
    $region31: #{tpu_custom_call.1} parent=1 // pred_check_branch
      %34 = sbr.rel (0) target = $region33
    $region32: #{tpu_custom_call.1} parent=1 // pred_region
      _
    $region33: #{tpu_custom_call.1} parent=1 // pred_fallthru
      _
    // Predicated region
    $region34: #{tpu_custom_call.1} parent=1 // pred_check
      _
    $region35: #{tpu_custom_call.1} parent=1 // pred_check_branch
      %36 = sbr.rel (0) target = $region37
    $region36: #{tpu_custom_call.1} parent=1 // pred_region
      _
    $region37: #{tpu_custom_call.1} parent=1 // pred_fallthru
      _
    // Predicated region
    $region38: #{tpu_custom_call.1} parent=1 // pred_check
      _
    $region39: #{tpu_custom_call.1} parent=1 // pred_check_branch
      %38 = sbr.rel (0) target = $region41
    $region40: #{tpu_custom_call.1} parent=1 // pred_region
      _
    $region41: #{tpu_custom_call.1} parent=1 // pred_fallthru
      _
    // Predicated region
    $region42: #{tpu_custom_call.1} parent=1 // pred_check
      _
    $region43: #{tpu_custom_call.1} parent=1 // pred_check_branch
      %40 = sbr.rel (0) target = $region45
    $region44: #{tpu_custom_call.1} parent=1 // pred_region
      _
    $region45: #{tpu_custom_call.1} parent=1 // pred_fallthru
      _
    %v42 = vld [vmem:[%s0] sm:$0xff]
    %v43 = vld [vmem:[%s0 + $0x8] sm:$0xff]
    %v44 = vld [vmem:[%s0 + $0x10] sm:$0xf]
    %v45 = vld [vmem:[%s0 + $0x18] sm:$0xf]
    %v46 = vpack.c.bf16 %v44, %v42
    %v47 = vpack.c.bf16 %v45, %v43
    %v48 = vld [vmem:[%s1] sm:$0xf]
    %v49 = vld [vmem:[%s1 + $0x4] sm:$0xf]
    %v50 = vld [vmem:[%s1 + $0x8] sm:$0xf]
    %v51 = vld [vmem:[%s1 + $0xc] sm:$0xf]
    %v52 = vld [vmem:[%s1 + $0x10] sm:$0xf]
    %v53 = vld [vmem:[%s1 + $0x14] sm:$0xf]
    %v54 = vld [vmem:[%s1 + $0x18] sm:$0xf]
    %v55 = vld [vmem:[%s1 + $0x1c] sm:$0xf]
    %v56 = vld [vmem:[%s1 + $0x20] sm:$0xf]
    %v57 = vld [vmem:[%s1 + $0x24] sm:$0xf]
    %v58 = vld [vmem:[%s1 + $0x28] sm:$0xf]
    %v59 = vld [vmem:[%s1 + $0x2c] sm:$0xf]
    %v60 = vld [vmem:[%s1 + $0x30] sm:$0xf]
    %v61 = vld [vmem:[%s1 + $0x34] sm:$0xf]
    %v62 = vld [vmem:[%s1 + $0x38] sm:$0xf]
    %v63 = vld [vmem:[%s1 + $0x3c] sm:$0xf]
    %v64 = vld [vmem:[%s2] sm:$0xff]
    %v65 = vld [vmem:[%s2 + $0x8] sm:$0xff]
    %v66 = vld [vmem:[%s2 + $0x10] sm:$0xff]
    %v67 = vld [vmem:[%s2 + $0x18] sm:$0xff]
    %v68 = vld [vmem:[%s2 + $0x20] sm:$0xff]
    %v69 = vld [vmem:[%s2 + $0x28] sm:$0xff]
    %v70 = vld [vmem:[%s2 + $0x30] sm:$0xff]
    %v71 = vld [vmem:[%s2 + $0x38] sm:$0xff]
    %v72 = vld [vmem:[%s2 + $0x40] sm:$0xff]
    %v73 = vld [vmem:[%s2 + $0x48] sm:$0xff]
    %v74 = vld [vmem:[%s2 + $0x50] sm:$0xff]
    %v75 = vld [vmem:[%s2 + $0x58] sm:$0xff]
    %v76 = vld [vmem:[%s2 + $0x60] sm:$0xff]
    %v77 = vld [vmem:[%s2 + $0x68] sm:$0xff]
    %v78 = vld [vmem:[%s2 + $0x70] sm:$0xff]
    %v79 = vld [vmem:[%s2 + $0x78] sm:$0xff]
    %81 = vset.pattern.permute.xlu0 0
    %82 = vperm.xlu0 %81, %v64
    %v83 = vpop.permute.xlu0 %82
    %86 = vset.pattern.permute.xlu0 0
    %87 = vperm.xlu0 %86, %v65
    %v88 = vpop.permute.xlu0 %87
    %91 = vset.pattern.permute.xlu0 0
    %92 = vperm.xlu0 %91, %v66
    %v93 = vpop.permute.xlu0 %92
    %96 = vset.pattern.permute.xlu0 0
    %97 = vperm.xlu0 %96, %v67
    %v98 = vpop.permute.xlu0 %97
    %101 = vset.pattern.permute.xlu0 0
    %102 = vperm.xlu0 %101, %v68
    %v103 = vpop.permute.xlu0 %102
    %106 = vset.pattern.permute.xlu0 0
    %107 = vperm.xlu0 %106, %v69
    %v108 = vpop.permute.xlu0 %107
    %111 = vset.pattern.permute.xlu0 0
    %112 = vperm.xlu0 %111, %v70
    %v113 = vpop.permute.xlu0 %112
    %116 = vset.pattern.permute.xlu0 0
    %117 = vperm.xlu0 %116, %v71
    %v118 = vpop.permute.xlu0 %117
    %121 = vset.pattern.permute.xlu0 0
    %122 = vperm.xlu0 %121, %v72
    %v123 = vpop.permute.xlu0 %122
    %126 = vset.pattern.permute.xlu0 0
    %127 = vperm.xlu0 %126, %v73
    %v128 = vpop.permute.xlu0 %127
    %131 = vset.pattern.permute.xlu0 0
    %132 = vperm.xlu0 %131, %v74
    %v133 = vpop.permute.xlu0 %132
    %136 = vset.pattern.permute.xlu0 0
    %137 = vperm.xlu0 %136, %v75
    %v138 = vpop.permute.xlu0 %137
    %141 = vset.pattern.permute.xlu0 0
    %142 = vperm.xlu0 %141, %v76
    %v143 = vpop.permute.xlu0 %142
    %146 = vset.pattern.permute.xlu0 0
    %147 = vperm.xlu0 %146, %v77
    %v148 = vpop.permute.xlu0 %147
    %151 = vset.pattern.permute.xlu0 0
    %152 = vperm.xlu0 %151, %v78
    %v153 = vpop.permute.xlu0 %152
    %156 = vset.pattern.permute.xlu0 0
    %157 = vperm.xlu0 %156, %v79
    %v158 = vpop.permute.xlu0 %157
    %v176 = vunpack.c.l.b16 %v48
    %v177 = vunpack.c.l.b16 %v49
    %v178 = vunpack.c.l.b16 %v50
    %v179 = vunpack.c.l.b16 %v51
    %v180 = vunpack.c.l.b16 %v52
    %v181 = vunpack.c.l.b16 %v53
    %v182 = vunpack.c.l.b16 %v54
    %v183 = vunpack.c.l.b16 %v55
    %v184 = vunpack.c.l.b16 %v56
    %v185 = vunpack.c.l.b16 %v57
    %v186 = vunpack.c.l.b16 %v58
    %v187 = vunpack.c.l.b16 %v59
    %v188 = vunpack.c.l.b16 %v60
    %v189 = vunpack.c.l.b16 %v61
    %v190 = vunpack.c.l.b16 %v62
    %v191 = vunpack.c.l.b16 %v63
    %v192 = vpack.c.b16 %v177, %v176
    %v193 = vpack.c.b16 %v179, %v178
    %v194 = vpack.c.b16 %v181, %v180
    %v195 = vpack.c.b16 %v183, %v182
    %v196 = vpack.c.b16 %v185, %v184
    %v197 = vpack.c.b16 %v187, %v186
    %v198 = vpack.c.b16 %v189, %v188
    %v199 = vpack.c.b16 %v191, %v190
    %vm200 = vcmask 97280
    %v202 = vsel %vm200, %v192, 0
    %v205 = vsel %vm200, %v193, 0
    %v208 = vsel %vm200, %v194, 0
    %v211 = vsel %vm200, %v195, 0
    %v214 = vsel %vm200, %v196, 0
    %v217 = vsel %vm200, %v197, 0
    %v220 = vsel %vm200, %v198, 0
    %v223 = vsel %vm200, %v199, 0
    %vm225 = vcmask 1045504
    %v227 = vsel %vm225, %v46, 0
    %v230 = vsel %vm225, %v47, 0
    %232 = vmatpush.bf16.msra.mxu0 0
    %233 = vmatpush.bf16.msra.mxu0 0
    %234 = vmatpush.bf16.msra.mxu0 0
    %235 = vmatpush.bf16.msra.mxu0 0
    %236 = vmatpush.bf16.msra.mxu0 0
    %237 = vmatpush.bf16.msra.mxu0 0
    %238 = vmatpush.bf16.msra.mxu0 0
    %239 = vmatpush.bf16.msra.mxu0 %v227
    %240 = vmatmul.bf16.gmra.mxu0 %v202
    %v241 = vpop.f32.mrf.mxu0
    %v242 = vadd.f32 %v83, %v241
    %v243 = vpop.f32.mrf.mxu0
    %v244 = vadd.f32 %v88, %v243
    %245 = vmatmul.bf16.gmra.mxu0 %v205
    %v246 = vpop.f32.mrf.mxu0
    %v247 = vadd.f32 %v93, %v246
    %v248 = vpop.f32.mrf.mxu0
    %v249 = vadd.f32 %v98, %v248
    %250 = vmatmul.bf16.gmra.mxu0 %v208
    %v251 = vpop.f32.mrf.mxu0
    %v252 = vadd.f32 %v103, %v251
    %v253 = vpop.f32.mrf.mxu0
    %v254 = vadd.f32 %v108, %v253
    %255 = vmatmul.bf16.gmra.mxu0 %v211
    %v256 = vpop.f32.mrf.mxu0
    %v257 = vadd.f32 %v113, %v256
    %v258 = vpop.f32.mrf.mxu0
    %v259 = vadd.f32 %v118, %v258
    %260 = vmatmul.bf16.gmra.mxu0 %v214
    %v261 = vpop.f32.mrf.mxu0
    %v262 = vadd.f32 %v123, %v261
    %v263 = vpop.f32.mrf.mxu0
    %v264 = vadd.f32 %v128, %v263
    %265 = vmatmul.bf16.gmra.mxu0 %v217
    %v266 = vpop.f32.mrf.mxu0
    %v267 = vadd.f32 %v133, %v266
    %v268 = vpop.f32.mrf.mxu0
    %v269 = vadd.f32 %v138, %v268
    %270 = vmatmul.bf16.gmra.mxu0 %v220
    %v271 = vpop.f32.mrf.mxu0
    %v272 = vadd.f32 %v143, %v271
    %v273 = vpop.f32.mrf.mxu0
    %v274 = vadd.f32 %v148, %v273
    %275 = vmatmul.bf16.gmra.mxu0 %v223
    %v276 = vpop.f32.mrf.mxu0
    %v277 = vadd.f32 %v153, %v276
    %v278 = vpop.f32.mrf.mxu0
    %v279 = vadd.f32 %v158, %v278
    %280 = vdwg.mxu0
    %281 = vmatpush.bf16.msra.mxu0 0
    %282 = vmatpush.bf16.msra.mxu0 0
    %283 = vmatpush.bf16.msra.mxu0 0
    %284 = vmatpush.bf16.msra.mxu0 0
    %285 = vmatpush.bf16.msra.mxu0 0
    %286 = vmatpush.bf16.msra.mxu0 0
    %287 = vmatpush.bf16.msra.mxu0 0
    %288 = vmatpush.bf16.msra.mxu0 %v230
    %289 = vmatmul.bf16.gmra.mxu0 %v202
    %v290 = vpop.f32.mrf.mxu0
    %v291 = vadd.f32 %v83, %v290
    %v292 = vpop.f32.mrf.mxu0
    %v293 = vadd.f32 %v88, %v292
    %294 = vmatmul.bf16.gmra.mxu0 %v205
    %v295 = vpop.f32.mrf.mxu0
    %v296 = vadd.f32 %v93, %v295
    %v297 = vpop.f32.mrf.mxu0
    %v298 = vadd.f32 %v98, %v297
    %299 = vmatmul.bf16.gmra.mxu0 %v208
    %v300 = vpop.f32.mrf.mxu0
    %v301 = vadd.f32 %v103, %v300
    %v302 = vpop.f32.mrf.mxu0
    %v303 = vadd.f32 %v108, %v302
    %304 = vmatmul.bf16.gmra.mxu0 %v211
    %v305 = vpop.f32.mrf.mxu0
    %v306 = vadd.f32 %v113, %v305
    %v307 = vpop.f32.mrf.mxu0
    %v308 = vadd.f32 %v118, %v307
    %309 = vmatmul.bf16.gmra.mxu0 %v214
    %v310 = vpop.f32.mrf.mxu0
    %v311 = vadd.f32 %v123, %v310
    %v312 = vpop.f32.mrf.mxu0
    %v313 = vadd.f32 %v128, %v312
    %314 = vmatmul.bf16.gmra.mxu0 %v217
    %v315 = vpop.f32.mrf.mxu0
    %v316 = vadd.f32 %v133, %v315
    %v317 = vpop.f32.mrf.mxu0
    %v318 = vadd.f32 %v138, %v317
    %319 = vmatmul.bf16.gmra.mxu0 %v220
    %v320 = vpop.f32.mrf.mxu0
    %v321 = vadd.f32 %v143, %v320
    %v322 = vpop.f32.mrf.mxu0
    %v323 = vadd.f32 %v148, %v322
    %324 = vmatmul.bf16.gmra.mxu0 %v223
    %v325 = vpop.f32.mrf.mxu0
    %v326 = vadd.f32 %v153, %v325
    %v327 = vpop.f32.mrf.mxu0
    %v328 = vadd.f32 %v158, %v327
    %329 = vdwg.mxu0
    %v330 = vmax.f32 %v242, 0.0
    %v331 = vmax.f32 %v291, 0.0
    %v332 = vmax.f32 %v244, 0.0
    %v333 = vmax.f32 %v293, 0.0
    %v334 = vmax.f32 %v247, 0.0
    %v335 = vmax.f32 %v296, 0.0
    %v336 = vmax.f32 %v249, 0.0
    %v337 = vmax.f32 %v298, 0.0
    %v338 = vmax.f32 %v252, 0.0
    %v339 = vmax.f32 %v301, 0.0
    %v340 = vmax.f32 %v254, 0.0
    %v341 = vmax.f32 %v303, 0.0
    %v342 = vmax.f32 %v257, 0.0
    %v343 = vmax.f32 %v306, 0.0
    %v344 = vmax.f32 %v259, 0.0
    %v345 = vmax.f32 %v308, 0.0
    %v346 = vmax.f32 %v262, 0.0
    %v347 = vmax.f32 %v311, 0.0
    %v348 = vmax.f32 %v264, 0.0
    %v349 = vmax.f32 %v313, 0.0
    %v350 = vmax.f32 %v267, 0.0
    %v351 = vmax.f32 %v316, 0.0
    %v352 = vmax.f32 %v269, 0.0
    %v353 = vmax.f32 %v318, 0.0
    %v354 = vmax.f32 %v272, 0.0
    %v355 = vmax.f32 %v321, 0.0
    %v356 = vmax.f32 %v274, 0.0
    %v357 = vmax.f32 %v323, 0.0
    %v358 = vmax.f32 %v277, 0.0
    %v359 = vmax.f32 %v326, 0.0
    %v360 = vmax.f32 %v279, 0.0
    %v361 = vmax.f32 %v328, 0.0
    %v362 = vpack.c.bf16 %v332, %v330
    %v363 = vpack.c.bf16 %v333, %v331
    %v364 = vpack.c.bf16 %v336, %v334
    %v365 = vpack.c.bf16 %v337, %v335
    %v366 = vpack.c.bf16 %v340, %v338
    %v367 = vpack.c.bf16 %v341, %v339
    %v368 = vpack.c.bf16 %v344, %v342
    %v369 = vpack.c.bf16 %v345, %v343
    %v370 = vpack.c.bf16 %v348, %v346
    %v371 = vpack.c.bf16 %v349, %v347
    %v372 = vpack.c.bf16 %v352, %v350
    %v373 = vpack.c.bf16 %v353, %v351
    %v374 = vpack.c.bf16 %v356, %v354
    %v375 = vpack.c.bf16 %v357, %v355
    %v376 = vpack.c.bf16 %v360, %v358
    %v377 = vpack.c.bf16 %v361, %v359
    %v378 = vld [vmem:[%s3] sm:$0xf]
    %v379 = vld [vmem:[%s3 + $0x4] sm:$0xf]
    %v380 = vld [vmem:[%s3 + $0x8] sm:$0xf]
    %v381 = vld [vmem:[%s3 + $0xc] sm:$0xf]
    %v382 = vld [vmem:[%s3 + $0x10] sm:$0xf]
    %v383 = vld [vmem:[%s3 + $0x14] sm:$0xf]
    %v384 = vld [vmem:[%s3 + $0x18] sm:$0xf]
    %v385 = vld [vmem:[%s3 + $0x1c] sm:$0xf]
    %v386 = vld [vmem:[%s3 + $0x20] sm:$0xf]
    %v387 = vld [vmem:[%s3 + $0x24] sm:$0xf]
    %v388 = vld [vmem:[%s3 + $0x28] sm:$0xf]
    %v389 = vld [vmem:[%s3 + $0x2c] sm:$0xf]
    %v390 = vld [vmem:[%s3 + $0x30] sm:$0xf]
    %v391 = vld [vmem:[%s3 + $0x34] sm:$0xf]
    %v392 = vld [vmem:[%s3 + $0x38] sm:$0xf]
    %v393 = vld [vmem:[%s3 + $0x3c] sm:$0xf]
    %v394 = vld [vmem:[%s3 + $0x40] sm:$0xf]
    %v395 = vld [vmem:[%s3 + $0x44] sm:$0xf]
    %v396 = vld [vmem:[%s3 + $0x48] sm:$0xf]
    %v397 = vld [vmem:[%s3 + $0x4c] sm:$0xf]
    %v398 = vld [vmem:[%s3 + $0x50] sm:$0xf]
    %v399 = vld [vmem:[%s3 + $0x54] sm:$0xf]
    %v400 = vld [vmem:[%s3 + $0x58] sm:$0xf]
    %v401 = vld [vmem:[%s3 + $0x5c] sm:$0xf]
    %v402 = vld [vmem:[%s3 + $0x60] sm:$0xf]
    %v403 = vld [vmem:[%s3 + $0x64] sm:$0xf]
    %v404 = vld [vmem:[%s3 + $0x68] sm:$0xf]
    %v405 = vld [vmem:[%s3 + $0x6c] sm:$0xf]
    %v406 = vld [vmem:[%s3 + $0x70] sm:$0xf]
    %v407 = vld [vmem:[%s3 + $0x74] sm:$0xf]
    %v408 = vld [vmem:[%s3 + $0x78] sm:$0xf]
    %v409 = vld [vmem:[%s3 + $0x7c] sm:$0xf]
    %v410 = vld [vmem:[%s4] sm:$0xff]
    %v411 = vld [vmem:[%s4 + $0x8] sm:$0xff]
    %v412 = vld [vmem:[%s4 + $0x10] sm:$0xff]
    %v413 = vld [vmem:[%s4 + $0x18] sm:$0xff]
    %v414 = vld [vmem:[%s4 + $0x20] sm:$0xff]
    %v415 = vld [vmem:[%s4 + $0x28] sm:$0xff]
    %v416 = vld [vmem:[%s4 + $0x30] sm:$0xff]
    %v417 = vld [vmem:[%s4 + $0x38] sm:$0xff]
    %v418 = vld [vmem:[%s4 + $0x40] sm:$0xff]
    %v419 = vld [vmem:[%s4 + $0x48] sm:$0xff]
    %v420 = vld [vmem:[%s4 + $0x50] sm:$0xff]
    %v421 = vld [vmem:[%s4 + $0x58] sm:$0xff]
    %v422 = vld [vmem:[%s4 + $0x60] sm:$0xff]
    %v423 = vld [vmem:[%s4 + $0x68] sm:$0xff]
    %v424 = vld [vmem:[%s4 + $0x70] sm:$0xff]
    %v425 = vld [vmem:[%s4 + $0x78] sm:$0xff]
    %v426 = vld [vmem:[%s4 + $0x80] sm:$0xff]
    %v427 = vld [vmem:[%s4 + $0x88] sm:$0xff]
    %v428 = vld [vmem:[%s4 + $0x90] sm:$0xff]
    %v429 = vld [vmem:[%s4 + $0x98] sm:$0xff]
    %v430 = vld [vmem:[%s4 + $0xa0] sm:$0xff]
    %v431 = vld [vmem:[%s4 + $0xa8] sm:$0xff]
    %v432 = vld [vmem:[%s4 + $0xb0] sm:$0xff]
    %v433 = vld [vmem:[%s4 + $0xb8] sm:$0xff]
    %v434 = vld [vmem:[%s4 + $0xc0] sm:$0xff]
    %v435 = vld [vmem:[%s4 + $0xc8] sm:$0xff]
    %v436 = vld [vmem:[%s4 + $0xd0] sm:$0xff]
    %v437 = vld [vmem:[%s4 + $0xd8] sm:$0xff]
    %v438 = vld [vmem:[%s4 + $0xe0] sm:$0xff]
    %v439 = vld [vmem:[%s4 + $0xe8] sm:$0xff]
    %v440 = vld [vmem:[%s4 + $0xf0] sm:$0xff]
    %v441 = vld [vmem:[%s4 + $0xf8] sm:$0xff]
    %443 = vset.pattern.permute.xlu0 0
    %444 = vperm.xlu0 %443, %v410
    %v445 = vpop.permute.xlu0 %444
    %448 = vset.pattern.permute.xlu0 0
    %449 = vperm.xlu0 %448, %v411
    %v450 = vpop.permute.xlu0 %449
    %453 = vset.pattern.permute.xlu0 0
    %454 = vperm.xlu0 %453, %v412
    %v455 = vpop.permute.xlu0 %454
    %458 = vset.pattern.permute.xlu0 0
    %459 = vperm.xlu0 %458, %v413
    %v460 = vpop.permute.xlu0 %459
    %463 = vset.pattern.permute.xlu0 0
    %464 = vperm.xlu0 %463, %v414
    %v465 = vpop.permute.xlu0 %464
    %468 = vset.pattern.permute.xlu0 0
    %469 = vperm.xlu0 %468, %v415
    %v470 = vpop.permute.xlu0 %469
    %473 = vset.pattern.permute.xlu0 0
    %474 = vperm.xlu0 %473, %v416
    %v475 = vpop.permute.xlu0 %474
    %478 = vset.pattern.permute.xlu0 0
    %479 = vperm.xlu0 %478, %v417
    %v480 = vpop.permute.xlu0 %479
    %483 = vset.pattern.permute.xlu0 0
    %484 = vperm.xlu0 %483, %v418
    %v485 = vpop.permute.xlu0 %484
    %488 = vset.pattern.permute.xlu0 0
    %489 = vperm.xlu0 %488, %v419
    %v490 = vpop.permute.xlu0 %489
    %493 = vset.pattern.permute.xlu0 0
    %494 = vperm.xlu0 %493, %v420
    %v495 = vpop.permute.xlu0 %494
    %498 = vset.pattern.permute.xlu0 0
    %499 = vperm.xlu0 %498, %v421
    %v500 = vpop.permute.xlu0 %499
    %503 = vset.pattern.permute.xlu0 0
    %504 = vperm.xlu0 %503, %v422
    %v505 = vpop.permute.xlu0 %504
    %508 = vset.pattern.permute.xlu0 0
    %509 = vperm.xlu0 %508, %v423
    %v510 = vpop.permute.xlu0 %509
    %513 = vset.pattern.permute.xlu0 0
    %514 = vperm.xlu0 %513, %v424
    %v515 = vpop.permute.xlu0 %514
    %518 = vset.pattern.permute.xlu0 0
    %519 = vperm.xlu0 %518, %v425
    %v520 = vpop.permute.xlu0 %519
    %523 = vset.pattern.permute.xlu0 0
    %524 = vperm.xlu0 %523, %v426
    %v525 = vpop.permute.xlu0 %524
    %528 = vset.pattern.permute.xlu0 0
    %529 = vperm.xlu0 %528, %v427
    %v530 = vpop.permute.xlu0 %529
    %533 = vset.pattern.permute.xlu0 0
    %534 = vperm.xlu0 %533, %v428
    %v535 = vpop.permute.xlu0 %534
    %538 = vset.pattern.permute.xlu0 0
    %539 = vperm.xlu0 %538, %v429
    %v540 = vpop.permute.xlu0 %539
    %543 = vset.pattern.permute.xlu0 0
    %544 = vperm.xlu0 %543, %v430
    %v545 = vpop.permute.xlu0 %544
    %548 = vset.pattern.permute.xlu0 0
    %549 = vperm.xlu0 %548, %v431
    %v550 = vpop.permute.xlu0 %549
    %553 = vset.pattern.permute.xlu0 0
    %554 = vperm.xlu0 %553, %v432
    %v555 = vpop.permute.xlu0 %554
    %558 = vset.pattern.permute.xlu0 0
    %559 = vperm.xlu0 %558, %v433
    %v560 = vpop.permute.xlu0 %559
    %563 = vset.pattern.permute.xlu0 0
    %564 = vperm.xlu0 %563, %v434
    %v565 = vpop.permute.xlu0 %564
    %568 = vset.pattern.permute.xlu0 0
    %569 = vperm.xlu0 %568, %v435
    %v570 = vpop.permute.xlu0 %569
    %573 = vset.pattern.permute.xlu0 0
    %574 = vperm.xlu0 %573, %v436
    %v575 = vpop.permute.xlu0 %574
    %578 = vset.pattern.permute.xlu0 0
    %579 = vperm.xlu0 %578, %v437
    %v580 = vpop.permute.xlu0 %579
    %583 = vset.pattern.permute.xlu0 0
    %584 = vperm.xlu0 %583, %v438
    %v585 = vpop.permute.xlu0 %584
    %588 = vset.pattern.permute.xlu0 0
    %589 = vperm.xlu0 %588, %v439
    %v590 = vpop.permute.xlu0 %589
    %593 = vset.pattern.permute.xlu0 0
    %594 = vperm.xlu0 %593, %v440
    %v595 = vpop.permute.xlu0 %594
    %598 = vset.pattern.permute.xlu0 0
    %599 = vperm.xlu0 %598, %v441
    %v600 = vpop.permute.xlu0 %599
    %v634 = vunpack.c.l.b16 %v378
    %v635 = vunpack.c.l.b16 %v379
    %v636 = vunpack.c.l.b16 %v380
    %v637 = vunpack.c.l.b16 %v381
    %v638 = vunpack.c.l.b16 %v382
    %v639 = vunpack.c.l.b16 %v383
    %v640 = vunpack.c.l.b16 %v384
    %v641 = vunpack.c.l.b16 %v385
    %v642 = vunpack.c.l.b16 %v386
    %v643 = vunpack.c.l.b16 %v387
    %v644 = vunpack.c.l.b16 %v388
    %v645 = vunpack.c.l.b16 %v389
    %v646 = vunpack.c.l.b16 %v390
    %v647 = vunpack.c.l.b16 %v391
    %v648 = vunpack.c.l.b16 %v392
    %v649 = vunpack.c.l.b16 %v393
    %v650 = vunpack.c.l.b16 %v394
    %v651 = vunpack.c.l.b16 %v395
    %v652 = vunpack.c.l.b16 %v396
    %v653 = vunpack.c.l.b16 %v397
    %v654 = vunpack.c.l.b16 %v398
    %v655 = vunpack.c.l.b16 %v399
    %v656 = vunpack.c.l.b16 %v400
    %v657 = vunpack.c.l.b16 %v401
    %v658 = vunpack.c.l.b16 %v402
    %v659 = vunpack.c.l.b16 %v403
    %v660 = vunpack.c.l.b16 %v404
    %v661 = vunpack.c.l.b16 %v405
    %v662 = vunpack.c.l.b16 %v406
    %v663 = vunpack.c.l.b16 %v407
    %v664 = vunpack.c.l.b16 %v408
    %v665 = vunpack.c.l.b16 %v409
    %v666 = vpack.c.b16 %v635, %v634
    %v667 = vpack.c.b16 %v637, %v636
    %v668 = vpack.c.b16 %v639, %v638
    %v669 = vpack.c.b16 %v641, %v640
    %v670 = vpack.c.b16 %v643, %v642
    %v671 = vpack.c.b16 %v645, %v644
    %v672 = vpack.c.b16 %v647, %v646
    %v673 = vpack.c.b16 %v649, %v648
    %v674 = vpack.c.b16 %v651, %v650
    %v675 = vpack.c.b16 %v653, %v652
    %v676 = vpack.c.b16 %v655, %v654
    %v677 = vpack.c.b16 %v657, %v656
    %v678 = vpack.c.b16 %v659, %v658
    %v679 = vpack.c.b16 %v661, %v660
    %v680 = vpack.c.b16 %v663, %v662
    %v681 = vpack.c.b16 %v665, %v664
    %698 = vmatpush.bf16.msra.mxu0 %v376
    %699 = vmatpush.bf16.msra.mxu0 %v374
    %700 = vmatpush.bf16.msra.mxu0 %v372
    %701 = vmatpush.bf16.msra.mxu0 %v370
    %702 = vmatpush.bf16.msra.mxu0 %v368
    %703 = vmatpush.bf16.msra.mxu0 %v366
    %704 = vmatpush.bf16.msra.mxu0 %v364
    %705 = vmatpush.bf16.msra.mxu0 %v362
    %706 = vmatmul.bf16.gmra.mxu0 %v666
    %v707 = vpop.f32.mrf.mxu0
    %v708 = vadd.f32 %v445, %v707
    %v709 = vpop.f32.mrf.mxu0
    %v710 = vadd.f32 %v450, %v709
    %711 = vmatmul.bf16.gmra.mxu0 %v667
    %v712 = vpop.f32.mrf.mxu0
    %v713 = vadd.f32 %v455, %v712
    %v714 = vpop.f32.mrf.mxu0
    %v715 = vadd.f32 %v460, %v714
    %716 = vmatmul.bf16.gmra.mxu0 %v668
    %v717 = vpop.f32.mrf.mxu0
    %v718 = vadd.f32 %v465, %v717
    %v719 = vpop.f32.mrf.mxu0
    %v720 = vadd.f32 %v470, %v719
    %721 = vmatmul.bf16.gmra.mxu0 %v669
    %v722 = vpop.f32.mrf.mxu0
    %v723 = vadd.f32 %v475, %v722
    %v724 = vpop.f32.mrf.mxu0
    %v725 = vadd.f32 %v480, %v724
    %726 = vmatmul.bf16.gmra.mxu0 %v670
    %v727 = vpop.f32.mrf.mxu0
    %v728 = vadd.f32 %v485, %v727
    %v729 = vpop.f32.mrf.mxu0
    %v730 = vadd.f32 %v490, %v729
    %731 = vmatmul.bf16.gmra.mxu0 %v671
    %v732 = vpop.f32.mrf.mxu0
    %v733 = vadd.f32 %v495, %v732
    %v734 = vpop.f32.mrf.mxu0
    %v735 = vadd.f32 %v500, %v734
    %736 = vmatmul.bf16.gmra.mxu0 %v672
    %v737 = vpop.f32.mrf.mxu0
    %v738 = vadd.f32 %v505, %v737
    %v739 = vpop.f32.mrf.mxu0
    %v740 = vadd.f32 %v510, %v739
    %741 = vmatmul.bf16.gmra.mxu0 %v673
    %v742 = vpop.f32.mrf.mxu0
    %v743 = vadd.f32 %v515, %v742
    %v744 = vpop.f32.mrf.mxu0
    %v745 = vadd.f32 %v520, %v744
    %746 = vmatmul.bf16.gmra.mxu0 %v674
    %v747 = vpop.f32.mrf.mxu0
    %v748 = vadd.f32 %v525, %v747
    %v749 = vpop.f32.mrf.mxu0
    %v750 = vadd.f32 %v530, %v749
    %751 = vmatmul.bf16.gmra.mxu0 %v675
    %v752 = vpop.f32.mrf.mxu0
    %v753 = vadd.f32 %v535, %v752
    %v754 = vpop.f32.mrf.mxu0
    %v755 = vadd.f32 %v540, %v754
    %756 = vmatmul.bf16.gmra.mxu0 %v676
    %v757 = vpop.f32.mrf.mxu0
    %v758 = vadd.f32 %v545, %v757
    %v759 = vpop.f32.mrf.mxu0
    %v760 = vadd.f32 %v550, %v759
    %761 = vmatmul.bf16.gmra.mxu0 %v677
    %v762 = vpop.f32.mrf.mxu0
    %v763 = vadd.f32 %v555, %v762
    %v764 = vpop.f32.mrf.mxu0
    %v765 = vadd.f32 %v560, %v764
    %766 = vmatmul.bf16.gmra.mxu0 %v678
    %v767 = vpop.f32.mrf.mxu0
    %v768 = vadd.f32 %v565, %v767
    %v769 = vpop.f32.mrf.mxu0
    %v770 = vadd.f32 %v570, %v769
    %771 = vmatmul.bf16.gmra.mxu0 %v679
    %v772 = vpop.f32.mrf.mxu0
    %v773 = vadd.f32 %v575, %v772
    %v774 = vpop.f32.mrf.mxu0
    %v775 = vadd.f32 %v580, %v774
    %776 = vmatmul.bf16.gmra.mxu0 %v680
    %v777 = vpop.f32.mrf.mxu0
    %v778 = vadd.f32 %v585, %v777
    %v779 = vpop.f32.mrf.mxu0
    %v780 = vadd.f32 %v590, %v779
    %781 = vmatmul.bf16.gmra.mxu0 %v681
    %v782 = vpop.f32.mrf.mxu0
    %v783 = vadd.f32 %v595, %v782
    %v784 = vpop.f32.mrf.mxu0
    %v785 = vadd.f32 %v600, %v784
    %786 = vdwg.mxu0
    %787 = vmatpush.bf16.msra.mxu0 %v377
    %788 = vmatpush.bf16.msra.mxu0 %v375
    %789 = vmatpush.bf16.msra.mxu0 %v373
    %790 = vmatpush.bf16.msra.mxu0 %v371
    %791 = vmatpush.bf16.msra.mxu0 %v369
    %792 = vmatpush.bf16.msra.mxu0 %v367
    %793 = vmatpush.bf16.msra.mxu0 %v365
    %794 = vmatpush.bf16.msra.mxu0 %v363
    %795 = vmatmul.bf16.gmra.mxu0 %v666
    %v796 = vpop.f32.mrf.mxu0
    %v797 = vadd.f32 %v445, %v796
    %v798 = vpop.f32.mrf.mxu0
    %v799 = vadd.f32 %v450, %v798
    %800 = vmatmul.bf16.gmra.mxu0 %v667
    %v801 = vpop.f32.mrf.mxu0
    %v802 = vadd.f32 %v455, %v801
    %v803 = vpop.f32.mrf.mxu0
    %v804 = vadd.f32 %v460, %v803
    %805 = vmatmul.bf16.gmra.mxu0 %v668
    %v806 = vpop.f32.mrf.mxu0
    %v807 = vadd.f32 %v465, %v806
    %v808 = vpop.f32.mrf.mxu0
    %v809 = vadd.f32 %v470, %v808
    %810 = vmatmul.bf16.gmra.mxu0 %v669
    %v811 = vpop.f32.mrf.mxu0
    %v812 = vadd.f32 %v475, %v811
    %v813 = vpop.f32.mrf.mxu0
    %v814 = vadd.f32 %v480, %v813
    %815 = vmatmul.bf16.gmra.mxu0 %v670
    %v816 = vpop.f32.mrf.mxu0
    %v817 = vadd.f32 %v485, %v816
    %v818 = vpop.f32.mrf.mxu0
    %v819 = vadd.f32 %v490, %v818
    %820 = vmatmul.bf16.gmra.mxu0 %v671
    %v821 = vpop.f32.mrf.mxu0
    %v822 = vadd.f32 %v495, %v821
    %v823 = vpop.f32.mrf.mxu0
    %v824 = vadd.f32 %v500, %v823
    %825 = vmatmul.bf16.gmra.mxu0 %v672
    %v826 = vpop.f32.mrf.mxu0
    %v827 = vadd.f32 %v505, %v826
    %v828 = vpop.f32.mrf.mxu0
    %v829 = vadd.f32 %v510, %v828
    %830 = vmatmul.bf16.gmra.mxu0 %v673
    %v831 = vpop.f32.mrf.mxu0
    %v832 = vadd.f32 %v515, %v831
    %v833 = vpop.f32.mrf.mxu0
    %v834 = vadd.f32 %v520, %v833
    %835 = vmatmul.bf16.gmra.mxu0 %v674
    %v836 = vpop.f32.mrf.mxu0
    %v837 = vadd.f32 %v525, %v836
    %v838 = vpop.f32.mrf.mxu0
    %v839 = vadd.f32 %v530, %v838
    %840 = vmatmul.bf16.gmra.mxu0 %v675
    %v841 = vpop.f32.mrf.mxu0
    %v842 = vadd.f32 %v535, %v841
    %v843 = vpop.f32.mrf.mxu0
    %v844 = vadd.f32 %v540, %v843
    %845 = vmatmul.bf16.gmra.mxu0 %v676
    %v846 = vpop.f32.mrf.mxu0
    %v847 = vadd.f32 %v545, %v846
    %v848 = vpop.f32.mrf.mxu0
    %v849 = vadd.f32 %v550, %v848
    %850 = vmatmul.bf16.gmra.mxu0 %v677
    %v851 = vpop.f32.mrf.mxu0
    %v852 = vadd.f32 %v555, %v851
    %v853 = vpop.f32.mrf.mxu0
    %v854 = vadd.f32 %v560, %v853
    %855 = vmatmul.bf16.gmra.mxu0 %v678
    %v856 = vpop.f32.mrf.mxu0
    %v857 = vadd.f32 %v565, %v856
    %v858 = vpop.f32.mrf.mxu0
    %v859 = vadd.f32 %v570, %v858
    %860 = vmatmul.bf16.gmra.mxu0 %v679
    %v861 = vpop.f32.mrf.mxu0
    %v862 = vadd.f32 %v575, %v861
    %v863 = vpop.f32.mrf.mxu0
    %v864 = vadd.f32 %v580, %v863
    %865 = vmatmul.bf16.gmra.mxu0 %v680
    %v866 = vpop.f32.mrf.mxu0
    %v867 = vadd.f32 %v585, %v866
    %v868 = vpop.f32.mrf.mxu0
    %v869 = vadd.f32 %v590, %v868
    %870 = vmatmul.bf16.gmra.mxu0 %v681
    %v871 = vpop.f32.mrf.mxu0
    %v872 = vadd.f32 %v595, %v871
    %v873 = vpop.f32.mrf.mxu0
    %v874 = vadd.f32 %v600, %v873
    %875 = vdwg.mxu0
    %v876 = vmax.f32 %v708, 0.0
    %v877 = vmax.f32 %v797, 0.0
    %v878 = vmax.f32 %v710, 0.0
    %v879 = vmax.f32 %v799, 0.0
    %v880 = vmax.f32 %v713, 0.0
    %v881 = vmax.f32 %v802, 0.0
    %v882 = vmax.f32 %v715, 0.0
    %v883 = vmax.f32 %v804, 0.0
    %v884 = vmax.f32 %v718, 0.0
    %v885 = vmax.f32 %v807, 0.0
    %v886 = vmax.f32 %v720, 0.0
    %v887 = vmax.f32 %v809, 0.0
    %v888 = vmax.f32 %v723, 0.0
    %v889 = vmax.f32 %v812, 0.0
    %v890 = vmax.f32 %v725, 0.0
    %v891 = vmax.f32 %v814, 0.0
    %v892 = vmax.f32 %v728, 0.0
    %v893 = vmax.f32 %v817, 0.0
    %v894 = vmax.f32 %v730, 0.0
    %v895 = vmax.f32 %v819, 0.0
    %v896 = vmax.f32 %v733, 0.0
    %v897 = vmax.f32 %v822, 0.0
    %v898 = vmax.f32 %v735, 0.0
    %v899 = vmax.f32 %v824, 0.0
    %v900 = vmax.f32 %v738, 0.0
    %v901 = vmax.f32 %v827, 0.0
    %v902 = vmax.f32 %v740, 0.0
    %v903 = vmax.f32 %v829, 0.0
    %v904 = vmax.f32 %v743, 0.0
    %v905 = vmax.f32 %v832, 0.0
    %v906 = vmax.f32 %v745, 0.0
    %v907 = vmax.f32 %v834, 0.0
    %v908 = vmax.f32 %v748, 0.0
    %v909 = vmax.f32 %v837, 0.0
    %v910 = vmax.f32 %v750, 0.0
    %v911 = vmax.f32 %v839, 0.0
    %v912 = vmax.f32 %v753, 0.0
    %v913 = vmax.f32 %v842, 0.0
    %v914 = vmax.f32 %v755, 0.0
    %v915 = vmax.f32 %v844, 0.0
    %v916 = vmax.f32 %v758, 0.0
    %v917 = vmax.f32 %v847, 0.0
    %v918 = vmax.f32 %v760, 0.0
    %v919 = vmax.f32 %v849, 0.0
    %v920 = vmax.f32 %v763, 0.0
    %v921 = vmax.f32 %v852, 0.0
    %v922 = vmax.f32 %v765, 0.0
    %v923 = vmax.f32 %v854, 0.0
    %v924 = vmax.f32 %v768, 0.0
    %v925 = vmax.f32 %v857, 0.0
    %v926 = vmax.f32 %v770, 0.0
    %v927 = vmax.f32 %v859, 0.0
    %v928 = vmax.f32 %v773, 0.0
    %v929 = vmax.f32 %v862, 0.0
    %v930 = vmax.f32 %v775, 0.0
    %v931 = vmax.f32 %v864, 0.0
    %v932 = vmax.f32 %v778, 0.0
    %v933 = vmax.f32 %v867, 0.0
    %v934 = vmax.f32 %v780, 0.0
    %v935 = vmax.f32 %v869, 0.0
    %v936 = vmax.f32 %v783, 0.0
    %v937 = vmax.f32 %v872, 0.0
    %v938 = vmax.f32 %v785, 0.0
    %v939 = vmax.f32 %v874, 0.0
    %v940 = vpack.c.bf16 %v878, %v876
    %v941 = vpack.c.bf16 %v879, %v877
    %v942 = vpack.c.bf16 %v882, %v880
    %v943 = vpack.c.bf16 %v883, %v881
    %v944 = vpack.c.bf16 %v886, %v884
    %v945 = vpack.c.bf16 %v887, %v885
    %v946 = vpack.c.bf16 %v890, %v888
    %v947 = vpack.c.bf16 %v891, %v889
    %v948 = vpack.c.bf16 %v894, %v892
    %v949 = vpack.c.bf16 %v895, %v893
    %v950 = vpack.c.bf16 %v898, %v896
    %v951 = vpack.c.bf16 %v899, %v897
    %v952 = vpack.c.bf16 %v902, %v900
    %v953 = vpack.c.bf16 %v903, %v901
    %v954 = vpack.c.bf16 %v906, %v904
    %v955 = vpack.c.bf16 %v907, %v905
    %v956 = vpack.c.bf16 %v910, %v908
    %v957 = vpack.c.bf16 %v911, %v909
    %v958 = vpack.c.bf16 %v914, %v912
    %v959 = vpack.c.bf16 %v915, %v913
    %v960 = vpack.c.bf16 %v918, %v916
    %v961 = vpack.c.bf16 %v919, %v917
    %v962 = vpack.c.bf16 %v922, %v920
    %v963 = vpack.c.bf16 %v923, %v921
    %v964 = vpack.c.bf16 %v926, %v924
    %v965 = vpack.c.bf16 %v927, %v925
    %v966 = vpack.c.bf16 %v930, %v928
    %v967 = vpack.c.bf16 %v931, %v929
    %v968 = vpack.c.bf16 %v934, %v932
    %v969 = vpack.c.bf16 %v935, %v933
    %v970 = vpack.c.bf16 %v938, %v936
    %v971 = vpack.c.bf16 %v939, %v937
    %v972 = vld [vmem:[%s5] sm:$0xff]
    %v973 = vld [vmem:[%s5 + $0x8] sm:$0xff]
    %v974 = vld [vmem:[%s5 + $0x10] sm:$0xff]
    %v975 = vld [vmem:[%s5 + $0x18] sm:$0xff]
    %v976 = vld [vmem:[%s5 + $0x20] sm:$0xff]
    %v977 = vld [vmem:[%s5 + $0x28] sm:$0xff]
    %v978 = vld [vmem:[%s5 + $0x30] sm:$0xff]
    %v979 = vld [vmem:[%s5 + $0x38] sm:$0xff]
    %v980 = vld [vmem:[%s5 + $0x40] sm:$0xff]
    %v981 = vld [vmem:[%s5 + $0x48] sm:$0xff]
    %v982 = vld [vmem:[%s5 + $0x50] sm:$0xff]
    %v983 = vld [vmem:[%s5 + $0x58] sm:$0xff]
    %v984 = vld [vmem:[%s5 + $0x60] sm:$0xff]
    %v985 = vld [vmem:[%s5 + $0x68] sm:$0xff]
    %v986 = vld [vmem:[%s5 + $0x70] sm:$0xff]
    %v987 = vld [vmem:[%s5 + $0x78] sm:$0xff]
    %v988 = vld [vmem:[%s5 + $0x80] sm:$0xff]
    %v989 = vld [vmem:[%s5 + $0x88] sm:$0xff]
    %v990 = vld [vmem:[%s5 + $0x90] sm:$0xff]
    %v991 = vld [vmem:[%s5 + $0x98] sm:$0xff]
    %v992 = vld [vmem:[%s5 + $0xa0] sm:$0xff]
    %v993 = vld [vmem:[%s5 + $0xa8] sm:$0xff]
    %v994 = vld [vmem:[%s5 + $0xb0] sm:$0xff]
    %v995 = vld [vmem:[%s5 + $0xb8] sm:$0xff]
    %v996 = vld [vmem:[%s5 + $0xc0] sm:$0xff]
    %v997 = vld [vmem:[%s5 + $0xc8] sm:$0xff]
    %v998 = vld [vmem:[%s5 + $0xd0] sm:$0xff]
    %v999 = vld [vmem:[%s5 + $0xd8] sm:$0xff]
    %v1000 = vld [vmem:[%s5 + $0xe0] sm:$0xff]
    %v1001 = vld [vmem:[%s5 + $0xe8] sm:$0xff]
    %v1002 = vld [vmem:[%s5 + $0xf0] sm:$0xff]
    %v1003 = vld [vmem:[%s5 + $0xf8] sm:$0xff]
    %v1004 = vld [vmem:[%s6] sm:$0xff]
    %v1005 = vld [vmem:[%s6 + $0x8] sm:$0xff]
    %v1006 = vld [vmem:[%s6 + $0x10] sm:$0xff]
    %v1007 = vld [vmem:[%s6 + $0x18] sm:$0xff]
    %v1008 = vld [vmem:[%s6 + $0x20] sm:$0xff]
    %v1009 = vld [vmem:[%s6 + $0x28] sm:$0xff]
    %v1010 = vld [vmem:[%s6 + $0x30] sm:$0xff]
    %v1011 = vld [vmem:[%s6 + $0x38] sm:$0xff]
    %v1012 = vld [vmem:[%s6 + $0x40] sm:$0xff]
    %v1013 = vld [vmem:[%s6 + $0x48] sm:$0xff]
    %v1014 = vld [vmem:[%s6 + $0x50] sm:$0xff]
    %v1015 = vld [vmem:[%s6 + $0x58] sm:$0xff]
    %v1016 = vld [vmem:[%s6 + $0x60] sm:$0xff]
    %v1017 = vld [vmem:[%s6 + $0x68] sm:$0xff]
    %v1018 = vld [vmem:[%s6 + $0x70] sm:$0xff]
    %v1019 = vld [vmem:[%s6 + $0x78] sm:$0xff]
    %v1020 = vld [vmem:[%s6 + $0x80] sm:$0xff]
    %v1021 = vld [vmem:[%s6 + $0x88] sm:$0xff]
    %v1022 = vld [vmem:[%s6 + $0x90] sm:$0xff]
    %v1023 = vld [vmem:[%s6 + $0x98] sm:$0xff]
    %v1024 = vld [vmem:[%s6 + $0xa0] sm:$0xff]
    %v1025 = vld [vmem:[%s6 + $0xa8] sm:$0xff]
    %v1026 = vld [vmem:[%s6 + $0xb0] sm:$0xff]
    %v1027 = vld [vmem:[%s6 + $0xb8] sm:$0xff]
    %v1028 = vld [vmem:[%s6 + $0xc0] sm:$0xff]
    %v1029 = vld [vmem:[%s6 + $0xc8] sm:$0xff]
    %v1030 = vld [vmem:[%s6 + $0xd0] sm:$0xff]
    %v1031 = vld [vmem:[%s6 + $0xd8] sm:$0xff]
    %v1032 = vld [vmem:[%s6 + $0xe0] sm:$0xff]
    %v1033 = vld [vmem:[%s6 + $0xe8] sm:$0xff]
    %v1034 = vld [vmem:[%s6 + $0xf0] sm:$0xff]
    %v1035 = vld [vmem:[%s6 + $0xf8] sm:$0xff]
    %1037 = vset.pattern.permute.xlu0 0
    %1038 = vperm.xlu0 %1037, %v1004
    %v1039 = vpop.permute.xlu0 %1038
    %1042 = vset.pattern.permute.xlu0 0
    %1043 = vperm.xlu0 %1042, %v1005
    %v1044 = vpop.permute.xlu0 %1043
    %1047 = vset.pattern.permute.xlu0 0
    %1048 = vperm.xlu0 %1047, %v1006
    %v1049 = vpop.permute.xlu0 %1048
    %1052 = vset.pattern.permute.xlu0 0
    %1053 = vperm.xlu0 %1052, %v1007
    %v1054 = vpop.permute.xlu0 %1053
    %1057 = vset.pattern.permute.xlu0 0
    %1058 = vperm.xlu0 %1057, %v1008
    %v1059 = vpop.permute.xlu0 %1058
    %1062 = vset.pattern.permute.xlu0 0
    %1063 = vperm.xlu0 %1062, %v1009
    %v1064 = vpop.permute.xlu0 %1063
    %1067 = vset.pattern.permute.xlu0 0
    %1068 = vperm.xlu0 %1067, %v1010
    %v1069 = vpop.permute.xlu0 %1068
    %1072 = vset.pattern.permute.xlu0 0
    %1073 = vperm.xlu0 %1072, %v1011
    %v1074 = vpop.permute.xlu0 %1073
    %1077 = vset.pattern.permute.xlu0 0
    %1078 = vperm.xlu0 %1077, %v1012
    %v1079 = vpop.permute.xlu0 %1078
    %1082 = vset.pattern.permute.xlu0 0
    %1083 = vperm.xlu0 %1082, %v1013
    %v1084 = vpop.permute.xlu0 %1083
    %1087 = vset.pattern.permute.xlu0 0
    %1088 = vperm.xlu0 %1087, %v1014
    %v1089 = vpop.permute.xlu0 %1088
    %1092 = vset.pattern.permute.xlu0 0
    %1093 = vperm.xlu0 %1092, %v1015
    %v1094 = vpop.permute.xlu0 %1093
    %1097 = vset.pattern.permute.xlu0 0
    %1098 = vperm.xlu0 %1097, %v1016
    %v1099 = vpop.permute.xlu0 %1098
    %1102 = vset.pattern.permute.xlu0 0
    %1103 = vperm.xlu0 %1102, %v1017
    %v1104 = vpop.permute.xlu0 %1103
    %1107 = vset.pattern.permute.xlu0 0
    %1108 = vperm.xlu0 %1107, %v1018
    %v1109 = vpop.permute.xlu0 %1108
    %1112 = vset.pattern.permute.xlu0 0
    %1113 = vperm.xlu0 %1112, %v1019
    %v1114 = vpop.permute.xlu0 %1113
    %1117 = vset.pattern.permute.xlu0 0
    %1118 = vperm.xlu0 %1117, %v1020
    %v1119 = vpop.permute.xlu0 %1118
    %1122 = vset.pattern.permute.xlu0 0
    %1123 = vperm.xlu0 %1122, %v1021
    %v1124 = vpop.permute.xlu0 %1123
    %1127 = vset.pattern.permute.xlu0 0
    %1128 = vperm.xlu0 %1127, %v1022
    %v1129 = vpop.permute.xlu0 %1128
    %1132 = vset.pattern.permute.xlu0 0
    %1133 = vperm.xlu0 %1132, %v1023
    %v1134 = vpop.permute.xlu0 %1133
    %1137 = vset.pattern.permute.xlu0 0
    %1138 = vperm.xlu0 %1137, %v1024
    %v1139 = vpop.permute.xlu0 %1138
    %1142 = vset.pattern.permute.xlu0 0
    %1143 = vperm.xlu0 %1142, %v1025
    %v1144 = vpop.permute.xlu0 %1143
    %1147 = vset.pattern.permute.xlu0 0
    %1148 = vperm.xlu0 %1147, %v1026
    %v1149 = vpop.permute.xlu0 %1148
    %1152 = vset.pattern.permute.xlu0 0
    %1153 = vperm.xlu0 %1152, %v1027
    %v1154 = vpop.permute.xlu0 %1153
    %1157 = vset.pattern.permute.xlu0 0
    %1158 = vperm.xlu0 %1157, %v1028
    %v1159 = vpop.permute.xlu0 %1158
    %1162 = vset.pattern.permute.xlu0 0
    %1163 = vperm.xlu0 %1162, %v1029
    %v1164 = vpop.permute.xlu0 %1163
    %1167 = vset.pattern.permute.xlu0 0
    %1168 = vperm.xlu0 %1167, %v1030
    %v1169 = vpop.permute.xlu0 %1168
    %1172 = vset.pattern.permute.xlu0 0
    %1173 = vperm.xlu0 %1172, %v1031
    %v1174 = vpop.permute.xlu0 %1173
    %1177 = vset.pattern.permute.xlu0 0
    %1178 = vperm.xlu0 %1177, %v1032
    %v1179 = vpop.permute.xlu0 %1178
    %1182 = vset.pattern.permute.xlu0 0
    %1183 = vperm.xlu0 %1182, %v1033
    %v1184 = vpop.permute.xlu0 %1183
    %1187 = vset.pattern.permute.xlu0 0
    %1188 = vperm.xlu0 %1187, %v1034
    %v1189 = vpop.permute.xlu0 %1188
    %1192 = vset.pattern.permute.xlu0 0
    %1193 = vperm.xlu0 %1192, %v1035
    %v1194 = vpop.permute.xlu0 %1193
    %v1228 = vunpack.c.l.b16 %v972
    %v1229 = vunpack.c.h.b16 %v972
    %v1230 = vunpack.c.l.b16 %v973
    %v1231 = vunpack.c.h.b16 %v973
    %v1232 = vunpack.c.l.b16 %v974
    %v1233 = vunpack.c.h.b16 %v974
    %v1234 = vunpack.c.l.b16 %v975
    %v1235 = vunpack.c.h.b16 %v975
    %v1236 = vunpack.c.l.b16 %v976
    %v1237 = vunpack.c.h.b16 %v976
    %v1238 = vunpack.c.l.b16 %v977
    %v1239 = vunpack.c.h.b16 %v977
    %v1240 = vunpack.c.l.b16 %v978
    %v1241 = vunpack.c.h.b16 %v978
    %v1242 = vunpack.c.l.b16 %v979
    %v1243 = vunpack.c.h.b16 %v979
    %v1244 = vunpack.c.l.b16 %v980
    %v1245 = vunpack.c.h.b16 %v980
    %v1246 = vunpack.c.l.b16 %v981
    %v1247 = vunpack.c.h.b16 %v981
    %v1248 = vunpack.c.l.b16 %v982
    %v1249 = vunpack.c.h.b16 %v982
    %v1250 = vunpack.c.l.b16 %v983
    %v1251 = vunpack.c.h.b16 %v983
    %v1252 = vunpack.c.l.b16 %v984
    %v1253 = vunpack.c.h.b16 %v984
    %v1254 = vunpack.c.l.b16 %v985
    %v1255 = vunpack.c.h.b16 %v985
    %v1256 = vunpack.c.l.b16 %v986
    %v1257 = vunpack.c.h.b16 %v986
    %v1258 = vunpack.c.l.b16 %v987
    %v1259 = vunpack.c.h.b16 %v987
    %v1260 = vunpack.c.l.b16 %v988
    %v1261 = vunpack.c.h.b16 %v988
    %v1262 = vunpack.c.l.b16 %v989
    %v1263 = vunpack.c.h.b16 %v989
    %v1264 = vunpack.c.l.b16 %v990
    %v1265 = vunpack.c.h.b16 %v990
    %v1266 = vunpack.c.l.b16 %v991
    %v1267 = vunpack.c.h.b16 %v991
    %v1268 = vunpack.c.l.b16 %v992
    %v1269 = vunpack.c.h.b16 %v992
    %v1270 = vunpack.c.l.b16 %v993
    %v1271 = vunpack.c.h.b16 %v993
    %v1272 = vunpack.c.l.b16 %v994
    %v1273 = vunpack.c.h.b16 %v994
    %v1274 = vunpack.c.l.b16 %v995
    %v1275 = vunpack.c.h.b16 %v995
    %v1276 = vunpack.c.l.b16 %v996
    %v1277 = vunpack.c.h.b16 %v996
    %v1278 = vunpack.c.l.b16 %v997
    %v1279 = vunpack.c.h.b16 %v997
    %v1280 = vunpack.c.l.b16 %v998
    %v1281 = vunpack.c.h.b16 %v998
    %v1282 = vunpack.c.l.b16 %v999
    %v1283 = vunpack.c.h.b16 %v999
    %v1284 = vunpack.c.l.b16 %v1000
    %v1285 = vunpack.c.h.b16 %v1000
    %v1286 = vunpack.c.l.b16 %v1001
    %v1287 = vunpack.c.h.b16 %v1001
    %v1288 = vunpack.c.l.b16 %v1002
    %v1289 = vunpack.c.h.b16 %v1002
    %v1290 = vunpack.c.l.b16 %v1003
    %v1291 = vunpack.c.h.b16 %v1003
    %v1292 = vpack.c.b16 %v1230, %v1228
    %v1293 = vpack.c.b16 %v1231, %v1229
    %v1294 = vpack.c.b16 %v1234, %v1232
    %v1295 = vpack.c.b16 %v1235, %v1233
    %v1296 = vpack.c.b16 %v1238, %v1236
    %v1297 = vpack.c.b16 %v1239, %v1237
    %v1298 = vpack.c.b16 %v1242, %v1240
    %v1299 = vpack.c.b16 %v1243, %v1241
    %v1300 = vpack.c.b16 %v1246, %v1244
    %v1301 = vpack.c.b16 %v1247, %v1245
    %v1302 = vpack.c.b16 %v1250, %v1248
    %v1303 = vpack.c.b16 %v1251, %v1249
    %v1304 = vpack.c.b16 %v1254, %v1252
    %v1305 = vpack.c.b16 %v1255, %v1253
    %v1306 = vpack.c.b16 %v1258, %v1256
    %v1307 = vpack.c.b16 %v1259, %v1257
    %v1308 = vpack.c.b16 %v1262, %v1260
    %v1309 = vpack.c.b16 %v1263, %v1261
    %v1310 = vpack.c.b16 %v1266, %v1264
    %v1311 = vpack.c.b16 %v1267, %v1265
    %v1312 = vpack.c.b16 %v1270, %v1268
    %v1313 = vpack.c.b16 %v1271, %v1269
    %v1314 = vpack.c.b16 %v1274, %v1272
    %v1315 = vpack.c.b16 %v1275, %v1273
    %v1316 = vpack.c.b16 %v1278, %v1276
    %v1317 = vpack.c.b16 %v1279, %v1277
    %v1318 = vpack.c.b16 %v1282, %v1280
    %v1319 = vpack.c.b16 %v1283, %v1281
    %v1320 = vpack.c.b16 %v1286, %v1284
    %v1321 = vpack.c.b16 %v1287, %v1285
    %v1322 = vpack.c.b16 %v1290, %v1288
    %v1323 = vpack.c.b16 %v1291, %v1289
    %1356 = vmatpush.bf16.msra.mxu0 %v954
    %1357 = vmatpush.bf16.msra.mxu0 %v952
    %1358 = vmatpush.bf16.msra.mxu0 %v950
    %1359 = vmatpush.bf16.msra.mxu0 %v948
    %1360 = vmatpush.bf16.msra.mxu0 %v946
    %1361 = vmatpush.bf16.msra.mxu0 %v944
    %1362 = vmatpush.bf16.msra.mxu0 %v942
    %1363 = vmatpush.bf16.msra.mxu0 %v940
    %1364 = vmatmul.bf16.gmra.mxu0 %v1292
    %v1365 = vpop.f32.mrf.mxu0
    %v1366 = vadd.f32 %v1039, %v1365
    %v1367 = vpop.f32.mrf.mxu0
    %v1368 = vadd.f32 %v1044, %v1367
    %1369 = vmatmul.bf16.gmra.mxu0 %v1294
    %v1370 = vpop.f32.mrf.mxu0
    %v1371 = vadd.f32 %v1049, %v1370
    %v1372 = vpop.f32.mrf.mxu0
    %v1373 = vadd.f32 %v1054, %v1372
    %1374 = vmatmul.bf16.gmra.mxu0 %v1296
    %v1375 = vpop.f32.mrf.mxu0
    %v1376 = vadd.f32 %v1059, %v1375
    %v1377 = vpop.f32.mrf.mxu0
    %v1378 = vadd.f32 %v1064, %v1377
    %1379 = vmatmul.bf16.gmra.mxu0 %v1298
    %v1380 = vpop.f32.mrf.mxu0
    %v1381 = vadd.f32 %v1069, %v1380
    %v1382 = vpop.f32.mrf.mxu0
    %v1383 = vadd.f32 %v1074, %v1382
    %1384 = vmatmul.bf16.gmra.mxu0 %v1300
    %v1385 = vpop.f32.mrf.mxu0
    %v1386 = vadd.f32 %v1079, %v1385
    %v1387 = vpop.f32.mrf.mxu0
    %v1388 = vadd.f32 %v1084, %v1387
    %1389 = vmatmul.bf16.gmra.mxu0 %v1302
    %v1390 = vpop.f32.mrf.mxu0
    %v1391 = vadd.f32 %v1089, %v1390
    %v1392 = vpop.f32.mrf.mxu0
    %v1393 = vadd.f32 %v1094, %v1392
    %1394 = vmatmul.bf16.gmra.mxu0 %v1304
    %v1395 = vpop.f32.mrf.mxu0
    %v1396 = vadd.f32 %v1099, %v1395
    %v1397 = vpop.f32.mrf.mxu0
    %v1398 = vadd.f32 %v1104, %v1397
    %1399 = vmatmul.bf16.gmra.mxu0 %v1306
    %v1400 = vpop.f32.mrf.mxu0
    %v1401 = vadd.f32 %v1109, %v1400
    %v1402 = vpop.f32.mrf.mxu0
    %v1403 = vadd.f32 %v1114, %v1402
    %1404 = vmatmul.bf16.gmra.mxu0 %v1308
    %v1405 = vpop.f32.mrf.mxu0
    %v1406 = vadd.f32 %v1119, %v1405
    %v1407 = vpop.f32.mrf.mxu0
    %v1408 = vadd.f32 %v1124, %v1407
    %1409 = vmatmul.bf16.gmra.mxu0 %v1310
    %v1410 = vpop.f32.mrf.mxu0
    %v1411 = vadd.f32 %v1129, %v1410
    %v1412 = vpop.f32.mrf.mxu0
    %v1413 = vadd.f32 %v1134, %v1412
    %1414 = vmatmul.bf16.gmra.mxu0 %v1312
    %v1415 = vpop.f32.mrf.mxu0
    %v1416 = vadd.f32 %v1139, %v1415
    %v1417 = vpop.f32.mrf.mxu0
    %v1418 = vadd.f32 %v1144, %v1417
    %1419 = vmatmul.bf16.gmra.mxu0 %v1314
    %v1420 = vpop.f32.mrf.mxu0
    %v1421 = vadd.f32 %v1149, %v1420
    %v1422 = vpop.f32.mrf.mxu0
    %v1423 = vadd.f32 %v1154, %v1422
    %1424 = vmatmul.bf16.gmra.mxu0 %v1316
    %v1425 = vpop.f32.mrf.mxu0
    %v1426 = vadd.f32 %v1159, %v1425
    %v1427 = vpop.f32.mrf.mxu0
    %v1428 = vadd.f32 %v1164, %v1427
    %1429 = vmatmul.bf16.gmra.mxu0 %v1318
    %v1430 = vpop.f32.mrf.mxu0
    %v1431 = vadd.f32 %v1169, %v1430
    %v1432 = vpop.f32.mrf.mxu0
    %v1433 = vadd.f32 %v1174, %v1432
    %1434 = vmatmul.bf16.gmra.mxu0 %v1320
    %v1435 = vpop.f32.mrf.mxu0
    %v1436 = vadd.f32 %v1179, %v1435
    %v1437 = vpop.f32.mrf.mxu0
    %v1438 = vadd.f32 %v1184, %v1437
    %1439 = vmatmul.bf16.gmra.mxu0 %v1322
    %v1440 = vpop.f32.mrf.mxu0
    %v1441 = vadd.f32 %v1189, %v1440
    %v1442 = vpop.f32.mrf.mxu0
    %v1443 = vadd.f32 %v1194, %v1442
    %1444 = vdwg.mxu0
    %1445 = vmatpush.bf16.msra.mxu0 %v970
    %1446 = vmatpush.bf16.msra.mxu0 %v968
    %1447 = vmatpush.bf16.msra.mxu0 %v966
    %1448 = vmatpush.bf16.msra.mxu0 %v964
    %1449 = vmatpush.bf16.msra.mxu0 %v962
    %1450 = vmatpush.bf16.msra.mxu0 %v960
    %1451 = vmatpush.bf16.msra.mxu0 %v958
    %1452 = vmatpush.bf16.msra.mxu0 %v956
    %1453 = vmatmul.bf16.gmra.mxu0 %v1293
    %v1454 = vpop.f32.mrf.mxu0
    %v1455 = vadd.f32 %v1366, %v1454
    %v1456 = vpop.f32.mrf.mxu0
    %v1457 = vadd.f32 %v1368, %v1456
    %1458 = vmatmul.bf16.gmra.mxu0 %v1295
    %v1459 = vpop.f32.mrf.mxu0
    %v1460 = vadd.f32 %v1371, %v1459
    %v1461 = vpop.f32.mrf.mxu0
    %v1462 = vadd.f32 %v1373, %v1461
    %1463 = vmatmul.bf16.gmra.mxu0 %v1297
    %v1464 = vpop.f32.mrf.mxu0
    %v1465 = vadd.f32 %v1376, %v1464
    %v1466 = vpop.f32.mrf.mxu0
    %v1467 = vadd.f32 %v1378, %v1466
    %1468 = vmatmul.bf16.gmra.mxu0 %v1299
    %v1469 = vpop.f32.mrf.mxu0
    %v1470 = vadd.f32 %v1381, %v1469
    %v1471 = vpop.f32.mrf.mxu0
    %v1472 = vadd.f32 %v1383, %v1471
    %1473 = vmatmul.bf16.gmra.mxu0 %v1301
    %v1474 = vpop.f32.mrf.mxu0
    %v1475 = vadd.f32 %v1386, %v1474
    %v1476 = vpop.f32.mrf.mxu0
    %v1477 = vadd.f32 %v1388, %v1476
    %1478 = vmatmul.bf16.gmra.mxu0 %v1303
    %v1479 = vpop.f32.mrf.mxu0
    %v1480 = vadd.f32 %v1391, %v1479
    %v1481 = vpop.f32.mrf.mxu0
    %v1482 = vadd.f32 %v1393, %v1481
    %1483 = vmatmul.bf16.gmra.mxu0 %v1305
    %v1484 = vpop.f32.mrf.mxu0
    %v1485 = vadd.f32 %v1396, %v1484
    %v1486 = vpop.f32.mrf.mxu0
    %v1487 = vadd.f32 %v1398, %v1486
    %1488 = vmatmul.bf16.gmra.mxu0 %v1307
    %v1489 = vpop.f32.mrf.mxu0
    %v1490 = vadd.f32 %v1401, %v1489
    %v1491 = vpop.f32.mrf.mxu0
    %v1492 = vadd.f32 %v1403, %v1491
    %1493 = vmatmul.bf16.gmra.mxu0 %v1309
    %v1494 = vpop.f32.mrf.mxu0
    %v1495 = vadd.f32 %v1406, %v1494
    %v1496 = vpop.f32.mrf.mxu0
    %v1497 = vadd.f32 %v1408, %v1496
    %1498 = vmatmul.bf16.gmra.mxu0 %v1311
    %v1499 = vpop.f32.mrf.mxu0
    %v1500 = vadd.f32 %v1411, %v1499
    %v1501 = vpop.f32.mrf.mxu0
    %v1502 = vadd.f32 %v1413, %v1501
    %1503 = vmatmul.bf16.gmra.mxu0 %v1313
    %v1504 = vpop.f32.mrf.mxu0
    %v1505 = vadd.f32 %v1416, %v1504
    %v1506 = vpop.f32.mrf.mxu0
    %v1507 = vadd.f32 %v1418, %v1506
    %1508 = vmatmul.bf16.gmra.mxu0 %v1315
    %v1509 = vpop.f32.mrf.mxu0
    %v1510 = vadd.f32 %v1421, %v1509
    %v1511 = vpop.f32.mrf.mxu0
    %v1512 = vadd.f32 %v1423, %v1511
    %1513 = vmatmul.bf16.gmra.mxu0 %v1317
    %v1514 = vpop.f32.mrf.mxu0
    %v1515 = vadd.f32 %v1426, %v1514
    %v1516 = vpop.f32.mrf.mxu0
    %v1517 = vadd.f32 %v1428, %v1516
    %1518 = vmatmul.bf16.gmra.mxu0 %v1319
    %v1519 = vpop.f32.mrf.mxu0
    %v1520 = vadd.f32 %v1431, %v1519
    %v1521 = vpop.f32.mrf.mxu0
    %v1522 = vadd.f32 %v1433, %v1521
    %1523 = vmatmul.bf16.gmra.mxu0 %v1321
    %v1524 = vpop.f32.mrf.mxu0
    %v1525 = vadd.f32 %v1436, %v1524
    %v1526 = vpop.f32.mrf.mxu0
    %v1527 = vadd.f32 %v1438, %v1526
    %1528 = vmatmul.bf16.gmra.mxu0 %v1323
    %v1529 = vpop.f32.mrf.mxu0
    %v1530 = vadd.f32 %v1441, %v1529
    %v1531 = vpop.f32.mrf.mxu0
    %v1532 = vadd.f32 %v1443, %v1531
    %1533 = vdwg.mxu0
    %1534 = vmatpush.bf16.msra.mxu0 %v955
    %1535 = vmatpush.bf16.msra.mxu0 %v953
    %1536 = vmatpush.bf16.msra.mxu0 %v951
    %1537 = vmatpush.bf16.msra.mxu0 %v949
    %1538 = vmatpush.bf16.msra.mxu0 %v947
    %1539 = vmatpush.bf16.msra.mxu0 %v945
    %1540 = vmatpush.bf16.msra.mxu0 %v943
    %1541 = vmatpush.bf16.msra.mxu0 %v941
    %1542 = vmatmul.bf16.gmra.mxu0 %v1292
    %v1543 = vpop.f32.mrf.mxu0
    %v1544 = vadd.f32 %v1039, %v1543
    %v1545 = vpop.f32.mrf.mxu0
    %v1546 = vadd.f32 %v1044, %v1545
    %1547 = vmatmul.bf16.gmra.mxu0 %v1294
    %v1548 = vpop.f32.mrf.mxu0
    %v1549 = vadd.f32 %v1049, %v1548
    %v1550 = vpop.f32.mrf.mxu0
    %v1551 = vadd.f32 %v1054, %v1550
    %1552 = vmatmul.bf16.gmra.mxu0 %v1296
    %v1553 = vpop.f32.mrf.mxu0
    %v1554 = vadd.f32 %v1059, %v1553
    %v1555 = vpop.f32.mrf.mxu0
    %v1556 = vadd.f32 %v1064, %v1555
    %1557 = vmatmul.bf16.gmra.mxu0 %v1298
    %v1558 = vpop.f32.mrf.mxu0
    %v1559 = vadd.f32 %v1069, %v1558
    %v1560 = vpop.f32.mrf.mxu0
    %v1561 = vadd.f32 %v1074, %v1560
    %1562 = vmatmul.bf16.gmra.mxu0 %v1300
    %v1563 = vpop.f32.mrf.mxu0
    %v1564 = vadd.f32 %v1079, %v1563
    %v1565 = vpop.f32.mrf.mxu0
    %v1566 = vadd.f32 %v1084, %v1565
    %1567 = vmatmul.bf16.gmra.mxu0 %v1302
    %v1568 = vpop.f32.mrf.mxu0
    %v1569 = vadd.f32 %v1089, %v1568
    %v1570 = vpop.f32.mrf.mxu0
    %v1571 = vadd.f32 %v1094, %v1570
    %1572 = vmatmul.bf16.gmra.mxu0 %v1304
    %v1573 = vpop.f32.mrf.mxu0
    %v1574 = vadd.f32 %v1099, %v1573
    %v1575 = vpop.f32.mrf.mxu0
    %v1576 = vadd.f32 %v1104, %v1575
    %1577 = vmatmul.bf16.gmra.mxu0 %v1306
    %v1578 = vpop.f32.mrf.mxu0
    %v1579 = vadd.f32 %v1109, %v1578
    %v1580 = vpop.f32.mrf.mxu0
    %v1581 = vadd.f32 %v1114, %v1580
    %1582 = vmatmul.bf16.gmra.mxu0 %v1308
    %v1583 = vpop.f32.mrf.mxu0
    %v1584 = vadd.f32 %v1119, %v1583
    %v1585 = vpop.f32.mrf.mxu0
    %v1586 = vadd.f32 %v1124, %v1585
    %1587 = vmatmul.bf16.gmra.mxu0 %v1310
    %v1588 = vpop.f32.mrf.mxu0
    %v1589 = vadd.f32 %v1129, %v1588
    %v1590 = vpop.f32.mrf.mxu0
    %v1591 = vadd.f32 %v1134, %v1590
    %1592 = vmatmul.bf16.gmra.mxu0 %v1312
    %v1593 = vpop.f32.mrf.mxu0
    %v1594 = vadd.f32 %v1139, %v1593
    %v1595 = vpop.f32.mrf.mxu0
    %v1596 = vadd.f32 %v1144, %v1595
    %1597 = vmatmul.bf16.gmra.mxu0 %v1314
    %v1598 = vpop.f32.mrf.mxu0
    %v1599 = vadd.f32 %v1149, %v1598
    %v1600 = vpop.f32.mrf.mxu0
    %v1601 = vadd.f32 %v1154, %v1600
    %1602 = vmatmul.bf16.gmra.mxu0 %v1316
    %v1603 = vpop.f32.mrf.mxu0
    %v1604 = vadd.f32 %v1159, %v1603
    %v1605 = vpop.f32.mrf.mxu0
    %v1606 = vadd.f32 %v1164, %v1605
    %1607 = vmatmul.bf16.gmra.mxu0 %v1318
    %v1608 = vpop.f32.mrf.mxu0
    %v1609 = vadd.f32 %v1169, %v1608
    %v1610 = vpop.f32.mrf.mxu0
    %v1611 = vadd.f32 %v1174, %v1610
    %1612 = vmatmul.bf16.gmra.mxu0 %v1320
    %v1613 = vpop.f32.mrf.mxu0
    %v1614 = vadd.f32 %v1179, %v1613
    %v1615 = vpop.f32.mrf.mxu0
    %v1616 = vadd.f32 %v1184, %v1615
    %1617 = vmatmul.bf16.gmra.mxu0 %v1322
    %v1618 = vpop.f32.mrf.mxu0
    %v1619 = vadd.f32 %v1189, %v1618
    %v1620 = vpop.f32.mrf.mxu0
    %v1621 = vadd.f32 %v1194, %v1620
    %1622 = vdwg.mxu0
    %1623 = vmatpush.bf16.msra.mxu0 %v971
    %1624 = vmatpush.bf16.msra.mxu0 %v969
    %1625 = vmatpush.bf16.msra.mxu0 %v967
    %1626 = vmatpush.bf16.msra.mxu0 %v965
    %1627 = vmatpush.bf16.msra.mxu0 %v963
    %1628 = vmatpush.bf16.msra.mxu0 %v961
    %1629 = vmatpush.bf16.msra.mxu0 %v959
    %1630 = vmatpush.bf16.msra.mxu0 %v957
    %1631 = vmatmul.bf16.gmra.mxu0 %v1293
    %v1632 = vpop.f32.mrf.mxu0
    %v1633 = vadd.f32 %v1544, %v1632
    %v1634 = vpop.f32.mrf.mxu0
    %v1635 = vadd.f32 %v1546, %v1634
    %1636 = vmatmul.bf16.gmra.mxu0 %v1295
    %v1637 = vpop.f32.mrf.mxu0
    %v1638 = vadd.f32 %v1549, %v1637
    %v1639 = vpop.f32.mrf.mxu0
    %v1640 = vadd.f32 %v1551, %v1639
    %1641 = vmatmul.bf16.gmra.mxu0 %v1297
    %v1642 = vpop.f32.mrf.mxu0
    %v1643 = vadd.f32 %v1554, %v1642
    %v1644 = vpop.f32.mrf.mxu0
    %v1645 = vadd.f32 %v1556, %v1644
    %1646 = vmatmul.bf16.gmra.mxu0 %v1299
    %v1647 = vpop.f32.mrf.mxu0
    %v1648 = vadd.f32 %v1559, %v1647
    %v1649 = vpop.f32.mrf.mxu0
    %v1650 = vadd.f32 %v1561, %v1649
    %1651 = vmatmul.bf16.gmra.mxu0 %v1301
    %v1652 = vpop.f32.mrf.mxu0
    %v1653 = vadd.f32 %v1564, %v1652
    %v1654 = vpop.f32.mrf.mxu0
    %v1655 = vadd.f32 %v1566, %v1654
    %1656 = vmatmul.bf16.gmra.mxu0 %v1303
    %v1657 = vpop.f32.mrf.mxu0
    %v1658 = vadd.f32 %v1569, %v1657
    %v1659 = vpop.f32.mrf.mxu0
    %v1660 = vadd.f32 %v1571, %v1659
    %1661 = vmatmul.bf16.gmra.mxu0 %v1305
    %v1662 = vpop.f32.mrf.mxu0
    %v1663 = vadd.f32 %v1574, %v1662
    %v1664 = vpop.f32.mrf.mxu0
    %v1665 = vadd.f32 %v1576, %v1664
    %1666 = vmatmul.bf16.gmra.mxu0 %v1307
    %v1667 = vpop.f32.mrf.mxu0
    %v1668 = vadd.f32 %v1579, %v1667
    %v1669 = vpop.f32.mrf.mxu0
    %v1670 = vadd.f32 %v1581, %v1669
    %1671 = vmatmul.bf16.gmra.mxu0 %v1309
    %v1672 = vpop.f32.mrf.mxu0
    %v1673 = vadd.f32 %v1584, %v1672
    %v1674 = vpop.f32.mrf.mxu0
    %v1675 = vadd.f32 %v1586, %v1674
    %1676 = vmatmul.bf16.gmra.mxu0 %v1311
    %v1677 = vpop.f32.mrf.mxu0
    %v1678 = vadd.f32 %v1589, %v1677
    %v1679 = vpop.f32.mrf.mxu0
    %v1680 = vadd.f32 %v1591, %v1679
    %1681 = vmatmul.bf16.gmra.mxu0 %v1313
    %v1682 = vpop.f32.mrf.mxu0
    %v1683 = vadd.f32 %v1594, %v1682
    %v1684 = vpop.f32.mrf.mxu0
    %v1685 = vadd.f32 %v1596, %v1684
    %1686 = vmatmul.bf16.gmra.mxu0 %v1315
    %v1687 = vpop.f32.mrf.mxu0
    %v1688 = vadd.f32 %v1599, %v1687
    %v1689 = vpop.f32.mrf.mxu0
    %v1690 = vadd.f32 %v1601, %v1689
    %1691 = vmatmul.bf16.gmra.mxu0 %v1317
    %v1692 = vpop.f32.mrf.mxu0
    %v1693 = vadd.f32 %v1604, %v1692
    %v1694 = vpop.f32.mrf.mxu0
    %v1695 = vadd.f32 %v1606, %v1694
    %1696 = vmatmul.bf16.gmra.mxu0 %v1319
    %v1697 = vpop.f32.mrf.mxu0
    %v1698 = vadd.f32 %v1609, %v1697
    %v1699 = vpop.f32.mrf.mxu0
    %v1700 = vadd.f32 %v1611, %v1699
    %1701 = vmatmul.bf16.gmra.mxu0 %v1321
    %v1702 = vpop.f32.mrf.mxu0
    %v1703 = vadd.f32 %v1614, %v1702
    %v1704 = vpop.f32.mrf.mxu0
    %v1705 = vadd.f32 %v1616, %v1704
    %1706 = vmatmul.bf16.gmra.mxu0 %v1323
    %v1707 = vpop.f32.mrf.mxu0
    %v1708 = vadd.f32 %v1619, %v1707
    %v1709 = vpop.f32.mrf.mxu0
    %v1710 = vadd.f32 %v1621, %v1709
    %1711 = vdwg.mxu0
    %v1712 = vmax.f32 %v1455, 0.0
    %v1713 = vmax.f32 %v1633, 0.0
    %v1714 = vmax.f32 %v1457, 0.0
    %v1715 = vmax.f32 %v1635, 0.0
    %v1716 = vmax.f32 %v1460, 0.0
    %v1717 = vmax.f32 %v1638, 0.0
    %v1718 = vmax.f32 %v1462, 0.0
    %v1719 = vmax.f32 %v1640, 0.0
    %v1720 = vmax.f32 %v1465, 0.0
    %v1721 = vmax.f32 %v1643, 0.0
    %v1722 = vmax.f32 %v1467, 0.0
    %v1723 = vmax.f32 %v1645, 0.0
    %v1724 = vmax.f32 %v1470, 0.0
    %v1725 = vmax.f32 %v1648, 0.0
    %v1726 = vmax.f32 %v1472, 0.0
    %v1727 = vmax.f32 %v1650, 0.0
    %v1728 = vmax.f32 %v1475, 0.0
    %v1729 = vmax.f32 %v1653, 0.0
    %v1730 = vmax.f32 %v1477, 0.0
    %v1731 = vmax.f32 %v1655, 0.0
    %v1732 = vmax.f32 %v1480, 0.0
    %v1733 = vmax.f32 %v1658, 0.0
    %v1734 = vmax.f32 %v1482, 0.0
    %v1735 = vmax.f32 %v1660, 0.0
    %v1736 = vmax.f32 %v1485, 0.0
    %v1737 = vmax.f32 %v1663, 0.0
    %v1738 = vmax.f32 %v1487, 0.0
    %v1739 = vmax.f32 %v1665, 0.0
    %v1740 = vmax.f32 %v1490, 0.0
    %v1741 = vmax.f32 %v1668, 0.0
    %v1742 = vmax.f32 %v1492, 0.0
    %v1743 = vmax.f32 %v1670, 0.0
    %v1744 = vmax.f32 %v1495, 0.0
    %v1745 = vmax.f32 %v1673, 0.0
    %v1746 = vmax.f32 %v1497, 0.0
    %v1747 = vmax.f32 %v1675, 0.0
    %v1748 = vmax.f32 %v1500, 0.0
    %v1749 = vmax.f32 %v1678, 0.0
    %v1750 = vmax.f32 %v1502, 0.0
    %v1751 = vmax.f32 %v1680, 0.0
    %v1752 = vmax.f32 %v1505, 0.0
    %v1753 = vmax.f32 %v1683, 0.0
    %v1754 = vmax.f32 %v1507, 0.0
    %v1755 = vmax.f32 %v1685, 0.0
    %v1756 = vmax.f32 %v1510, 0.0
    %v1757 = vmax.f32 %v1688, 0.0
    %v1758 = vmax.f32 %v1512, 0.0
    %v1759 = vmax.f32 %v1690, 0.0
    %v1760 = vmax.f32 %v1515, 0.0
    %v1761 = vmax.f32 %v1693, 0.0
    %v1762 = vmax.f32 %v1517, 0.0
    %v1763 = vmax.f32 %v1695, 0.0
    %v1764 = vmax.f32 %v1520, 0.0
    %v1765 = vmax.f32 %v1698, 0.0
    %v1766 = vmax.f32 %v1522, 0.0
    %v1767 = vmax.f32 %v1700, 0.0
    %v1768 = vmax.f32 %v1525, 0.0
    %v1769 = vmax.f32 %v1703, 0.0
    %v1770 = vmax.f32 %v1527, 0.0
    %v1771 = vmax.f32 %v1705, 0.0
    %v1772 = vmax.f32 %v1530, 0.0
    %v1773 = vmax.f32 %v1708, 0.0
    %v1774 = vmax.f32 %v1532, 0.0
    %v1775 = vmax.f32 %v1710, 0.0
    %v1776 = vpack.c.bf16 %v1714, %v1712
    %v1777 = vpack.c.bf16 %v1715, %v1713
    %v1778 = vpack.c.bf16 %v1718, %v1716
    %v1779 = vpack.c.bf16 %v1719, %v1717
    %v1780 = vpack.c.bf16 %v1722, %v1720
    %v1781 = vpack.c.bf16 %v1723, %v1721
    %v1782 = vpack.c.bf16 %v1726, %v1724
    %v1783 = vpack.c.bf16 %v1727, %v1725
    %v1784 = vpack.c.bf16 %v1730, %v1728
    %v1785 = vpack.c.bf16 %v1731, %v1729
    %v1786 = vpack.c.bf16 %v1734, %v1732
    %v1787 = vpack.c.bf16 %v1735, %v1733
    %v1788 = vpack.c.bf16 %v1738, %v1736
    %v1789 = vpack.c.bf16 %v1739, %v1737
    %v1790 = vpack.c.bf16 %v1742, %v1740
    %v1791 = vpack.c.bf16 %v1743, %v1741
    %v1792 = vpack.c.bf16 %v1746, %v1744
    %v1793 = vpack.c.bf16 %v1747, %v1745
    %v1794 = vpack.c.bf16 %v1750, %v1748
    %v1795 = vpack.c.bf16 %v1751, %v1749
    %v1796 = vpack.c.bf16 %v1754, %v1752
    %v1797 = vpack.c.bf16 %v1755, %v1753
    %v1798 = vpack.c.bf16 %v1758, %v1756
    %v1799 = vpack.c.bf16 %v1759, %v1757
    %v1800 = vpack.c.bf16 %v1762, %v1760
    %v1801 = vpack.c.bf16 %v1763, %v1761
    %v1802 = vpack.c.bf16 %v1766, %v1764
    %v1803 = vpack.c.bf16 %v1767, %v1765
    %v1804 = vpack.c.bf16 %v1770, %v1768
    %v1805 = vpack.c.bf16 %v1771, %v1769
    %v1806 = vpack.c.bf16 %v1774, %v1772
    %v1807 = vpack.c.bf16 %v1775, %v1773
    %v1808 = vld [vmem:[%s7] sm:$0xff]
    %v1809 = vld [vmem:[%s7 + $0x8] sm:$0xff]
    %v1810 = vld [vmem:[%s7 + $0x10] sm:$0xff]
    %v1811 = vld [vmem:[%s7 + $0x18] sm:$0xff]
    %v1812 = vld [vmem:[%s7 + $0x20] sm:$0xff]
    %v1813 = vld [vmem:[%s7 + $0x28] sm:$0xff]
    %v1814 = vld [vmem:[%s7 + $0x30] sm:$0xff]
    %v1815 = vld [vmem:[%s7 + $0x38] sm:$0xff]
    %v1816 = vld [vmem:[%s7 + $0x40] sm:$0xff]
    %v1817 = vld [vmem:[%s7 + $0x48] sm:$0xff]
    %v1818 = vld [vmem:[%s7 + $0x50] sm:$0xff]
    %v1819 = vld [vmem:[%s7 + $0x58] sm:$0xff]
    %v1820 = vld [vmem:[%s7 + $0x60] sm:$0xff]
    %v1821 = vld [vmem:[%s7 + $0x68] sm:$0xff]
    %v1822 = vld [vmem:[%s7 + $0x70] sm:$0xff]
    %v1823 = vld [vmem:[%s7 + $0x78] sm:$0xff]
    %v1824 = vld [vmem:[%s8] sm:$0xff]
    %v1825 = vld [vmem:[%s8 + $0x8] sm:$0xff]
    %v1826 = vld [vmem:[%s8 + $0x10] sm:$0xff]
    %v1827 = vld [vmem:[%s8 + $0x18] sm:$0xff]
    %v1828 = vld [vmem:[%s8 + $0x20] sm:$0xff]
    %v1829 = vld [vmem:[%s8 + $0x28] sm:$0xff]
    %v1830 = vld [vmem:[%s8 + $0x30] sm:$0xff]
    %v1831 = vld [vmem:[%s8 + $0x38] sm:$0xff]
    %v1832 = vld [vmem:[%s8 + $0x40] sm:$0xff]
    %v1833 = vld [vmem:[%s8 + $0x48] sm:$0xff]
    %v1834 = vld [vmem:[%s8 + $0x50] sm:$0xff]
    %v1835 = vld [vmem:[%s8 + $0x58] sm:$0xff]
    %v1836 = vld [vmem:[%s8 + $0x60] sm:$0xff]
    %v1837 = vld [vmem:[%s8 + $0x68] sm:$0xff]
    %v1838 = vld [vmem:[%s8 + $0x70] sm:$0xff]
    %v1839 = vld [vmem:[%s8 + $0x78] sm:$0xff]
    %1841 = vset.pattern.permute.xlu0 0
    %1842 = vperm.xlu0 %1841, %v1824
    %v1843 = vpop.permute.xlu0 %1842
    %1846 = vset.pattern.permute.xlu0 0
    %1847 = vperm.xlu0 %1846, %v1825
    %v1848 = vpop.permute.xlu0 %1847
    %1851 = vset.pattern.permute.xlu0 0
    %1852 = vperm.xlu0 %1851, %v1826
    %v1853 = vpop.permute.xlu0 %1852
    %1856 = vset.pattern.permute.xlu0 0
    %1857 = vperm.xlu0 %1856, %v1827
    %v1858 = vpop.permute.xlu0 %1857
    %1861 = vset.pattern.permute.xlu0 0
    %1862 = vperm.xlu0 %1861, %v1828
    %v1863 = vpop.permute.xlu0 %1862
    %1866 = vset.pattern.permute.xlu0 0
    %1867 = vperm.xlu0 %1866, %v1829
    %v1868 = vpop.permute.xlu0 %1867
    %1871 = vset.pattern.permute.xlu0 0
    %1872 = vperm.xlu0 %1871, %v1830
    %v1873 = vpop.permute.xlu0 %1872
    %1876 = vset.pattern.permute.xlu0 0
    %1877 = vperm.xlu0 %1876, %v1831
    %v1878 = vpop.permute.xlu0 %1877
    %1881 = vset.pattern.permute.xlu0 0
    %1882 = vperm.xlu0 %1881, %v1832
    %v1883 = vpop.permute.xlu0 %1882
    %1886 = vset.pattern.permute.xlu0 0
    %1887 = vperm.xlu0 %1886, %v1833
    %v1888 = vpop.permute.xlu0 %1887
    %1891 = vset.pattern.permute.xlu0 0
    %1892 = vperm.xlu0 %1891, %v1834
    %v1893 = vpop.permute.xlu0 %1892
    %1896 = vset.pattern.permute.xlu0 0
    %1897 = vperm.xlu0 %1896, %v1835
    %v1898 = vpop.permute.xlu0 %1897
    %1901 = vset.pattern.permute.xlu0 0
    %1902 = vperm.xlu0 %1901, %v1836
    %v1903 = vpop.permute.xlu0 %1902
    %1906 = vset.pattern.permute.xlu0 0
    %1907 = vperm.xlu0 %1906, %v1837
    %v1908 = vpop.permute.xlu0 %1907
    %1911 = vset.pattern.permute.xlu0 0
    %1912 = vperm.xlu0 %1911, %v1838
    %v1913 = vpop.permute.xlu0 %1912
    %1916 = vset.pattern.permute.xlu0 0
    %1917 = vperm.xlu0 %1916, %v1839
    %v1918 = vpop.permute.xlu0 %1917
    %v1936 = vunpack.c.l.b16 %v1808
    %v1937 = vunpack.c.h.b16 %v1808
    %v1938 = vunpack.c.l.b16 %v1809
    %v1939 = vunpack.c.h.b16 %v1809
    %v1940 = vunpack.c.l.b16 %v1810
    %v1941 = vunpack.c.h.b16 %v1810
    %v1942 = vunpack.c.l.b16 %v1811
    %v1943 = vunpack.c.h.b16 %v1811
    %v1944 = vunpack.c.l.b16 %v1812
    %v1945 = vunpack.c.h.b16 %v1812
    %v1946 = vunpack.c.l.b16 %v1813
    %v1947 = vunpack.c.h.b16 %v1813
    %v1948 = vunpack.c.l.b16 %v1814
    %v1949 = vunpack.c.h.b16 %v1814
    %v1950 = vunpack.c.l.b16 %v1815
    %v1951 = vunpack.c.h.b16 %v1815
    %v1952 = vunpack.c.l.b16 %v1816
    %v1953 = vunpack.c.h.b16 %v1816
    %v1954 = vunpack.c.l.b16 %v1817
    %v1955 = vunpack.c.h.b16 %v1817
    %v1956 = vunpack.c.l.b16 %v1818
    %v1957 = vunpack.c.h.b16 %v1818
    %v1958 = vunpack.c.l.b16 %v1819
    %v1959 = vunpack.c.h.b16 %v1819
    %v1960 = vunpack.c.l.b16 %v1820
    %v1961 = vunpack.c.h.b16 %v1820
    %v1962 = vunpack.c.l.b16 %v1821
    %v1963 = vunpack.c.h.b16 %v1821
    %v1964 = vunpack.c.l.b16 %v1822
    %v1965 = vunpack.c.h.b16 %v1822
    %v1966 = vunpack.c.l.b16 %v1823
    %v1967 = vunpack.c.h.b16 %v1823
    %v1968 = vpack.c.b16 %v1938, %v1936
    %v1969 = vpack.c.b16 %v1939, %v1937
    %v1970 = vpack.c.b16 %v1942, %v1940
    %v1971 = vpack.c.b16 %v1943, %v1941
    %v1972 = vpack.c.b16 %v1946, %v1944
    %v1973 = vpack.c.b16 %v1947, %v1945
    %v1974 = vpack.c.b16 %v1950, %v1948
    %v1975 = vpack.c.b16 %v1951, %v1949
    %v1976 = vpack.c.b16 %v1954, %v1952
    %v1977 = vpack.c.b16 %v1955, %v1953
    %v1978 = vpack.c.b16 %v1958, %v1956
    %v1979 = vpack.c.b16 %v1959, %v1957
    %v1980 = vpack.c.b16 %v1962, %v1960
    %v1981 = vpack.c.b16 %v1963, %v1961
    %v1982 = vpack.c.b16 %v1966, %v1964
    %v1983 = vpack.c.b16 %v1967, %v1965
    %2000 = vmatpush.bf16.msra.mxu0 %v1790
    %2001 = vmatpush.bf16.msra.mxu0 %v1788
    %2002 = vmatpush.bf16.msra.mxu0 %v1786
    %2003 = vmatpush.bf16.msra.mxu0 %v1784
    %2004 = vmatpush.bf16.msra.mxu0 %v1782
    %2005 = vmatpush.bf16.msra.mxu0 %v1780
    %2006 = vmatpush.bf16.msra.mxu0 %v1778
    %2007 = vmatpush.bf16.msra.mxu0 %v1776
    %2008 = vmatmul.bf16.gmra.mxu0 %v1968
    %v2009 = vpop.f32.mrf.mxu0
    %v2010 = vadd.f32 %v1843, %v2009
    %v2011 = vpop.f32.mrf.mxu0
    %v2012 = vadd.f32 %v1848, %v2011
    %2013 = vmatmul.bf16.gmra.mxu0 %v1970
    %v2014 = vpop.f32.mrf.mxu0
    %v2015 = vadd.f32 %v1853, %v2014
    %v2016 = vpop.f32.mrf.mxu0
    %v2017 = vadd.f32 %v1858, %v2016
    %2018 = vmatmul.bf16.gmra.mxu0 %v1972
    %v2019 = vpop.f32.mrf.mxu0
    %v2020 = vadd.f32 %v1863, %v2019
    %v2021 = vpop.f32.mrf.mxu0
    %v2022 = vadd.f32 %v1868, %v2021
    %2023 = vmatmul.bf16.gmra.mxu0 %v1974
    %v2024 = vpop.f32.mrf.mxu0
    %v2025 = vadd.f32 %v1873, %v2024
    %v2026 = vpop.f32.mrf.mxu0
    %v2027 = vadd.f32 %v1878, %v2026
    %2028 = vmatmul.bf16.gmra.mxu0 %v1976
    %v2029 = vpop.f32.mrf.mxu0
    %v2030 = vadd.f32 %v1883, %v2029
    %v2031 = vpop.f32.mrf.mxu0
    %v2032 = vadd.f32 %v1888, %v2031
    %2033 = vmatmul.bf16.gmra.mxu0 %v1978
    %v2034 = vpop.f32.mrf.mxu0
    %v2035 = vadd.f32 %v1893, %v2034
    %v2036 = vpop.f32.mrf.mxu0
    %v2037 = vadd.f32 %v1898, %v2036
    %2038 = vmatmul.bf16.gmra.mxu0 %v1980
    %v2039 = vpop.f32.mrf.mxu0
    %v2040 = vadd.f32 %v1903, %v2039
    %v2041 = vpop.f32.mrf.mxu0
    %v2042 = vadd.f32 %v1908, %v2041
    %2043 = vmatmul.bf16.gmra.mxu0 %v1982
    %v2044 = vpop.f32.mrf.mxu0
    %v2045 = vadd.f32 %v1913, %v2044
    %v2046 = vpop.f32.mrf.mxu0
    %v2047 = vadd.f32 %v1918, %v2046
    %2048 = vdwg.mxu0
    %2049 = vmatpush.bf16.msra.mxu0 %v1806
    %2050 = vmatpush.bf16.msra.mxu0 %v1804
    %2051 = vmatpush.bf16.msra.mxu0 %v1802
    %2052 = vmatpush.bf16.msra.mxu0 %v1800
    %2053 = vmatpush.bf16.msra.mxu0 %v1798
    %2054 = vmatpush.bf16.msra.mxu0 %v1796
    %2055 = vmatpush.bf16.msra.mxu0 %v1794
    %2056 = vmatpush.bf16.msra.mxu0 %v1792
    %2057 = vmatmul.bf16.gmra.mxu0 %v1969
    %v2058 = vpop.f32.mrf.mxu0
    %v2059 = vadd.f32 %v2010, %v2058
    %v2060 = vpop.f32.mrf.mxu0
    %v2061 = vadd.f32 %v2012, %v2060
    %2062 = vmatmul.bf16.gmra.mxu0 %v1971
    %v2063 = vpop.f32.mrf.mxu0
    %v2064 = vadd.f32 %v2015, %v2063
    %v2065 = vpop.f32.mrf.mxu0
    %v2066 = vadd.f32 %v2017, %v2065
    %2067 = vmatmul.bf16.gmra.mxu0 %v1973
    %v2068 = vpop.f32.mrf.mxu0
    %v2069 = vadd.f32 %v2020, %v2068
    %v2070 = vpop.f32.mrf.mxu0
    %v2071 = vadd.f32 %v2022, %v2070
    %2072 = vmatmul.bf16.gmra.mxu0 %v1975
    %v2073 = vpop.f32.mrf.mxu0
    %v2074 = vadd.f32 %v2025, %v2073
    %v2075 = vpop.f32.mrf.mxu0
    %v2076 = vadd.f32 %v2027, %v2075
    %2077 = vmatmul.bf16.gmra.mxu0 %v1977
    %v2078 = vpop.f32.mrf.mxu0
    %v2079 = vadd.f32 %v2030, %v2078
    %v2080 = vpop.f32.mrf.mxu0
    %v2081 = vadd.f32 %v2032, %v2080
    %2082 = vmatmul.bf16.gmra.mxu0 %v1979
    %v2083 = vpop.f32.mrf.mxu0
    %v2084 = vadd.f32 %v2035, %v2083
    %v2085 = vpop.f32.mrf.mxu0
    %v2086 = vadd.f32 %v2037, %v2085
    %2087 = vmatmul.bf16.gmra.mxu0 %v1981
    %v2088 = vpop.f32.mrf.mxu0
    %v2089 = vadd.f32 %v2040, %v2088
    %v2090 = vpop.f32.mrf.mxu0
    %v2091 = vadd.f32 %v2042, %v2090
    %2092 = vmatmul.bf16.gmra.mxu0 %v1983
    %v2093 = vpop.f32.mrf.mxu0
    %v2094 = vadd.f32 %v2045, %v2093
    %v2095 = vpop.f32.mrf.mxu0
    %v2096 = vadd.f32 %v2047, %v2095
    %2097 = vdwg.mxu0
    %2098 = vmatpush.bf16.msra.mxu0 %v1791
    %2099 = vmatpush.bf16.msra.mxu0 %v1789
    %2100 = vmatpush.bf16.msra.mxu0 %v1787
    %2101 = vmatpush.bf16.msra.mxu0 %v1785
    %2102 = vmatpush.bf16.msra.mxu0 %v1783
    %2103 = vmatpush.bf16.msra.mxu0 %v1781
    %2104 = vmatpush.bf16.msra.mxu0 %v1779
    %2105 = vmatpush.bf16.msra.mxu0 %v1777
    %2106 = vmatmul.bf16.gmra.mxu0 %v1968
    %v2107 = vpop.f32.mrf.mxu0
    %v2108 = vadd.f32 %v1843, %v2107
    %v2109 = vpop.f32.mrf.mxu0
    %v2110 = vadd.f32 %v1848, %v2109
    %2111 = vmatmul.bf16.gmra.mxu0 %v1970
    %v2112 = vpop.f32.mrf.mxu0
    %v2113 = vadd.f32 %v1853, %v2112
    %v2114 = vpop.f32.mrf.mxu0
    %v2115 = vadd.f32 %v1858, %v2114
    %2116 = vmatmul.bf16.gmra.mxu0 %v1972
    %v2117 = vpop.f32.mrf.mxu0
    %v2118 = vadd.f32 %v1863, %v2117
    %v2119 = vpop.f32.mrf.mxu0
    %v2120 = vadd.f32 %v1868, %v2119
    %2121 = vmatmul.bf16.gmra.mxu0 %v1974
    %v2122 = vpop.f32.mrf.mxu0
    %v2123 = vadd.f32 %v1873, %v2122
    %v2124 = vpop.f32.mrf.mxu0
    %v2125 = vadd.f32 %v1878, %v2124
    %2126 = vmatmul.bf16.gmra.mxu0 %v1976
    %v2127 = vpop.f32.mrf.mxu0
    %v2128 = vadd.f32 %v1883, %v2127
    %v2129 = vpop.f32.mrf.mxu0
    %v2130 = vadd.f32 %v1888, %v2129
    %2131 = vmatmul.bf16.gmra.mxu0 %v1978
    %v2132 = vpop.f32.mrf.mxu0
    %v2133 = vadd.f32 %v1893, %v2132
    %v2134 = vpop.f32.mrf.mxu0
    %v2135 = vadd.f32 %v1898, %v2134
    %2136 = vmatmul.bf16.gmra.mxu0 %v1980
    %v2137 = vpop.f32.mrf.mxu0
    %v2138 = vadd.f32 %v1903, %v2137
    %v2139 = vpop.f32.mrf.mxu0
    %v2140 = vadd.f32 %v1908, %v2139
    %2141 = vmatmul.bf16.gmra.mxu0 %v1982
    %v2142 = vpop.f32.mrf.mxu0
    %v2143 = vadd.f32 %v1913, %v2142
    %v2144 = vpop.f32.mrf.mxu0
    %v2145 = vadd.f32 %v1918, %v2144
    %2146 = vdwg.mxu0
    %2147 = vmatpush.bf16.msra.mxu0 %v1807
    %2148 = vmatpush.bf16.msra.mxu0 %v1805
    %2149 = vmatpush.bf16.msra.mxu0 %v1803
    %2150 = vmatpush.bf16.msra.mxu0 %v1801
    %2151 = vmatpush.bf16.msra.mxu0 %v1799
    %2152 = vmatpush.bf16.msra.mxu0 %v1797
    %2153 = vmatpush.bf16.msra.mxu0 %v1795
    %2154 = vmatpush.bf16.msra.mxu0 %v1793
    %2155 = vmatmul.bf16.gmra.mxu0 %v1969
    %v2156 = vpop.f32.mrf.mxu0
    %v2157 = vadd.f32 %v2108, %v2156
    %v2158 = vpop.f32.mrf.mxu0
    %v2159 = vadd.f32 %v2110, %v2158
    %2160 = vmatmul.bf16.gmra.mxu0 %v1971
    %v2161 = vpop.f32.mrf.mxu0
    %v2162 = vadd.f32 %v2113, %v2161
    %v2163 = vpop.f32.mrf.mxu0
    %v2164 = vadd.f32 %v2115, %v2163
    %2165 = vmatmul.bf16.gmra.mxu0 %v1973
    %v2166 = vpop.f32.mrf.mxu0
    %v2167 = vadd.f32 %v2118, %v2166
    %v2168 = vpop.f32.mrf.mxu0
    %v2169 = vadd.f32 %v2120, %v2168
    %2170 = vmatmul.bf16.gmra.mxu0 %v1975
    %v2171 = vpop.f32.mrf.mxu0
    %v2172 = vadd.f32 %v2123, %v2171
    %v2173 = vpop.f32.mrf.mxu0
    %v2174 = vadd.f32 %v2125, %v2173
    %2175 = vmatmul.bf16.gmra.mxu0 %v1977
    %v2176 = vpop.f32.mrf.mxu0
    %v2177 = vadd.f32 %v2128, %v2176
    %v2178 = vpop.f32.mrf.mxu0
    %v2179 = vadd.f32 %v2130, %v2178
    %2180 = vmatmul.bf16.gmra.mxu0 %v1979
    %v2181 = vpop.f32.mrf.mxu0
    %v2182 = vadd.f32 %v2133, %v2181
    %v2183 = vpop.f32.mrf.mxu0
    %v2184 = vadd.f32 %v2135, %v2183
    %2185 = vmatmul.bf16.gmra.mxu0 %v1981
    %v2186 = vpop.f32.mrf.mxu0
    %v2187 = vadd.f32 %v2138, %v2186
    %v2188 = vpop.f32.mrf.mxu0
    %v2189 = vadd.f32 %v2140, %v2188
    %2190 = vmatmul.bf16.gmra.mxu0 %v1983
    %v2191 = vpop.f32.mrf.mxu0
    %v2192 = vadd.f32 %v2143, %v2191
    %v2193 = vpop.f32.mrf.mxu0
    %v2194 = vadd.f32 %v2145, %v2193
    %2195 = vdwg.mxu0
    %v2196 = vmax.f32 %v2059, 0.0
    %v2197 = vmax.f32 %v2157, 0.0
    %v2198 = vmax.f32 %v2061, 0.0
    %v2199 = vmax.f32 %v2159, 0.0
    %v2200 = vmax.f32 %v2064, 0.0
    %v2201 = vmax.f32 %v2162, 0.0
    %v2202 = vmax.f32 %v2066, 0.0
    %v2203 = vmax.f32 %v2164, 0.0
    %v2204 = vmax.f32 %v2069, 0.0
    %v2205 = vmax.f32 %v2167, 0.0
    %v2206 = vmax.f32 %v2071, 0.0
    %v2207 = vmax.f32 %v2169, 0.0
    %v2208 = vmax.f32 %v2074, 0.0
    %v2209 = vmax.f32 %v2172, 0.0
    %v2210 = vmax.f32 %v2076, 0.0
    %v2211 = vmax.f32 %v2174, 0.0
    %v2212 = vmax.f32 %v2079, 0.0
    %v2213 = vmax.f32 %v2177, 0.0
    %v2214 = vmax.f32 %v2081, 0.0
    %v2215 = vmax.f32 %v2179, 0.0
    %v2216 = vmax.f32 %v2084, 0.0
    %v2217 = vmax.f32 %v2182, 0.0
    %v2218 = vmax.f32 %v2086, 0.0
    %v2219 = vmax.f32 %v2184, 0.0
    %v2220 = vmax.f32 %v2089, 0.0
    %v2221 = vmax.f32 %v2187, 0.0
    %v2222 = vmax.f32 %v2091, 0.0
    %v2223 = vmax.f32 %v2189, 0.0
    %v2224 = vmax.f32 %v2094, 0.0
    %v2225 = vmax.f32 %v2192, 0.0
    %v2226 = vmax.f32 %v2096, 0.0
    %v2227 = vmax.f32 %v2194, 0.0
    %v2228 = vpack.c.bf16 %v2198, %v2196
    %v2229 = vpack.c.bf16 %v2199, %v2197
    %v2230 = vpack.c.bf16 %v2202, %v2200
    %v2231 = vpack.c.bf16 %v2203, %v2201
    %v2232 = vpack.c.bf16 %v2206, %v2204
    %v2233 = vpack.c.bf16 %v2207, %v2205
    %v2234 = vpack.c.bf16 %v2210, %v2208
    %v2235 = vpack.c.bf16 %v2211, %v2209
    %v2236 = vpack.c.bf16 %v2214, %v2212
    %v2237 = vpack.c.bf16 %v2215, %v2213
    %v2238 = vpack.c.bf16 %v2218, %v2216
    %v2239 = vpack.c.bf16 %v2219, %v2217
    %v2240 = vpack.c.bf16 %v2222, %v2220
    %v2241 = vpack.c.bf16 %v2223, %v2221
    %v2242 = vpack.c.bf16 %v2226, %v2224
    %v2243 = vpack.c.bf16 %v2227, %v2225
    %v2244 = vld [vmem:[%s9] sm:$0x1]
    %v2245 = vld [vmem:[#allocation2] sm:$0x1]
    %2247 = vset.pattern.permute.xlu0 0
    %2248 = vperm.xlu0 %2247, %v2245
    %v2249 = vpop.permute.xlu0 %2248
    %v2251 = vperm.slane %v2249, 0
    %2252 = vmatpush.bf16.msra.mxu0 %v2242
    %2253 = vmatpush.bf16.msra.mxu0 %v2240
    %2254 = vmatpush.bf16.msra.mxu0 %v2238
    %2255 = vmatpush.bf16.msra.mxu0 %v2236
    %2256 = vmatpush.bf16.msra.mxu0 %v2234
    %2257 = vmatpush.bf16.msra.mxu0 %v2232
    %2258 = vmatpush.bf16.msra.mxu0 %v2230
    %2259 = vmatpush.bf16.msra.mxu0 %v2228
    %2260 = vmatmul.bf16.gmra.mxu0 %v2244
    %v2261 = vpop.f32.mrf.mxu0
    %v2262 = vadd.f32 %v2251, %v2261
    %v2263 = vpop.f32.mrf.mxu0
    %2264 = vdwg.mxu0
    %2265 = vmatpush.bf16.msra.mxu0 %v2243
    %2266 = vmatpush.bf16.msra.mxu0 %v2241
    %2267 = vmatpush.bf16.msra.mxu0 %v2239
    %2268 = vmatpush.bf16.msra.mxu0 %v2237
    %2269 = vmatpush.bf16.msra.mxu0 %v2235
    %2270 = vmatpush.bf16.msra.mxu0 %v2233
    %2271 = vmatpush.bf16.msra.mxu0 %v2231
    %2272 = vmatpush.bf16.msra.mxu0 %v2229
    %2273 = vmatmul.bf16.gmra.mxu0 %v2244
    %v2274 = vpop.f32.mrf.mxu0
    %v2275 = vadd.f32 %v2251, %v2274
    %v2276 = vpop.f32.mrf.mxu0
    %2277 = vdwg.mxu0
    %v2280 = vrot.slane %v2275, 7
    %vm2281 = vcmask 1040384
    %v2282 = vsel %vm2281, %v2262, %v2280
    %v2284 = vlaneseq
    %vm2285 = vcmp.ge.s32.totalorder %v2284, 0
    %vm2286 = vcmp.lt.s32.totalorder %v2284, 256
    %vm2287 = vmand %vm2285, %vm2286
    %2288 = vst.msk [vmem:[#allocation3] sm:$0x3] %vm2287, %v2282
    // Predicated region
    $region46: #{tpu_custom_call.1} parent=1 // pred_check
      _
    $region47: #{tpu_custom_call.1} parent=1 // pred_check_branch
      %2290 = sbr.rel (0) target = $region49
    $region48: #{tpu_custom_call.1} parent=1 // pred_region
      %2292 = vsyncadd [#allocation4], 0
      %s2294 = sshll.u32 [#allocation3], 4
      %s2295 = int_to_ptr.vmem [resolvable:$true] %s2294
      %s2296 = sshll.u32 %s11, 4
      %s2297 = int_to_ptr.hbm [resolvable:$true] %s2296
      %2299 = dma.vmem_to_hbm [thread:$0]  %s2295, 32, %s2297, [#allocation4]
    $region49: #{tpu_custom_call.1} parent=1 // pred_fallthru
      _
    // Predicated region
    $region50: #{tpu_custom_call.1} parent=1 // pred_check
      _
    $region51: #{tpu_custom_call.1} parent=1 // pred_check_branch
      %2301 = sbr.rel (0) target = $region53
    $region52: #{tpu_custom_call.1} parent=1 // pred_region
      %2303 = dma.done [#allocation4], 32
    $region53: #{tpu_custom_call.1} parent=1 // pred_fallthru
      _
    %2304 = vsyncpa [#allocation4], 1

</llo_original>
